<compile_context>
chip_gen: v6e
topology: v6e:2x2x1
jax: 0.10.0
libtpu: 0.0.40
codegen_flags: <defaults>
</compile_context>

<pallas_src>
import jax
import jax.numpy as jnp
from jax.experimental import pallas as pl
from jax.experimental.pallas import tpu as pltpu


def _round_up(x, m):
    return ((x + m - 1) // m) * m


def _mask_head_kernel(x_ref, w1_ref, b1_ref, w2_ref, b2_ref, y_ref):
    # x_ref : (TM, C)      bf16  -- one M tile of flattened ROI features
    # w1_ref: (C, 4*Dp)    bf16  -- 4 sub-pixel ConvTranspose2d slices, concat
    # b1_ref: (1, 4*Dp)    f32
    # w2_ref: (Dp, Kp)     bf16  -- 1x1 conv weight, transposed + zero-padded
    # b2_ref: (1, Kp)      f32
    # y_ref : (TM, 4*Kp)   out_dtype -- lane-dense logits, sub-pixel-major
    dp = w2_ref.shape[0]
    kp = w2_ref.shape[1]

    x = x_ref[...]            # reused by all 4 first matmuls
    w2 = w2_ref[...]          # operand-stationary across the 4 second matmuls
    b2 = b2_ref[...]

    # Static, short loop -> fully unrolled.  Per-subpixel compute keeps the
    # live f32 intermediate (TM, Dp) instead of (TM, 4*Dp).
    for s in range(4):
        t = jnp.dot(x, w1_ref[:, s * dp:(s + 1) * dp],
                    preferred_element_type=jnp.float32)
        t = t + b1_ref[:, s * dp:(s + 1) * dp]       # bias in f32
        t = jnp.maximum(t, 0.0)                      # ReLU on the accumulator
        t = t.astype(w2.dtype)                       # bf16 MXU operand
        ys = jnp.dot(t, w2, preferred_element_type=jnp.float32) + b2
        y_ref[:, s * kp:(s + 1) * kp] = ys.astype(y_ref.dtype)


def mask_head_nhwc(x_nhwc, wt, bt, wc, bc, *, tm=1024,
                   compute_dtype=jnp.bfloat16, out_dtype=jnp.bfloat16):
    """ConvTranspose2d(C->D, k=2, s=2) -> ReLU -> Conv2d(D->K, 1x1), NHWC.

    x_nhwc: [N, H, W, C] ROI features (channels-last)
    wt:     [C, D, 2, 2] ConvTranspose2d weight     bt: [D]
    wc:     [K, D, 1, 1] Conv2d 1x1 weight          bc: [K]
    returns [N, 2H, 2W, K] mask logits (channels-last, out_dtype)
    """
    N, H, W, C = x_nhwc.shape
    D = wt.shape[1]
    K = wc.shape[0]
    M = N * H * W

    Dp = _round_up(D, 128)    # lane-aligned hidden dim (zero-padded, exact)
    Kp = _round_up(K, 128)    # lane-dense class dim -> unmasked stores

    # M tiling: multiples of 16 (bf16 sublane packing).  When there is enough
    # work, keep >=2 grid steps so v7x megacore can split the parallel axis.
    M16 = _round_up(max(M, 16), 16)
    if M16 <= 256:
        TM, M_pad = M16, M16
    else:
        TM = min(_round_up(tm, 16), _round_up((M16 + 1) // 2, 16))
        M_pad = _round_up(M16, TM)

    # --- layout plumbing (plain JAX, channels-last -> trivial flatten) -------
    x_flat = x_nhwc.reshape(M, C)
    x_flat = jnp.pad(x_flat, ((0, M_pad - M), (0, 0))).astype(compute_dtype)

    # W1_all[c, s*Dp + d] = wt[c, d, a, b] with s = a*2 + b
    w1 = jnp.transpose(wt, (0, 2, 3, 1)).reshape(C, 4, D)
    w1 = jnp.pad(w1, ((0, 0), (0, 0), (0, Dp - D))).reshape(C, 4 * Dp)
    w1 = w1.astype(compute_dtype)
    b1 = jnp.tile(jnp.pad(bt, (0, Dp - D)), 4).reshape(1, 4 * Dp)
    b1 = b1.astype(jnp.float32)

    w2 = jnp.transpose(wc[:, :, 0, 0], (1, 0))                      # [D, K]
    w2 = jnp.pad(w2, ((0, Dp - D), (0, Kp - K))).astype(compute_dtype)
    b2 = jnp.pad(bc, (0, Kp - K)).reshape(1, Kp).astype(jnp.float32)

    grid = (M_pad // TM,)
    y = pl.pallas_call(
        _mask_head_kernel,
        out_shape=jax.ShapeDtypeStruct((M_pad, 4 * Kp), out_dtype),
        grid_spec=pltpu.PrefetchScalarGridSpec(
            num_scalar_prefetch=0,
            grid=grid,
            in_specs=[
                pl.BlockSpec((TM, C), lambda i: (i, 0)),
                pl.BlockSpec((C, 4 * Dp), lambda i: (0, 0)),   # VMEM-resident
                pl.BlockSpec((1, 4 * Dp), lambda i: (0, 0)),
                pl.BlockSpec((Dp, Kp), lambda i: (0, 0)),
                pl.BlockSpec((1, Kp), lambda i: (0, 0)),
            ],
            out_specs=pl.BlockSpec((TM, 4 * Kp), lambda i: (i, 0)),
        ),
        compiler_params=pltpu.CompilerParams(
            dimension_semantics=("parallel",),     # shard M tiles across TCs
            vmem_limit_bytes=32 * 1024 * 1024,
        ),
    )(x_flat, w1, b1, w2, b2)

    # y[m, s*Kp + k], m = n*H*W + i*W + j, s = a*2 + b -> out[n, 2i+a, 2j+b, k]
    # Padded M rows (garbage from relu(b1)@W2+b2) are discarded by y[:M].
    y = y[:M].reshape(N, H, W, 2, 2, Kp)[..., :K]   # (n, i, j, a, b, k)
    y = jnp.transpose(y, (0, 1, 3, 2, 4, 5))        # (n, i, a, j, b, k)
    return y.reshape(N, 2 * H, 2 * W, K)


def mask_rcnn_predictor_head(x_nchw, wt, bt, wc, bc, *, tm=1024,
                             compute_dtype=jnp.bfloat16,
                             out_dtype=jnp.bfloat16):
    """NCHW adapter matching the PyTorch mask-head interface.

    x_nchw: [N, C, H, W]; returns [N, K, 2H, 2W].  Prefer calling
    mask_head_nhwc directly to avoid the NCHW<->NHWC transposes.
    """
    x_nhwc = jnp.transpose(x_nchw, (0, 2, 3, 1))
    y = mask_head_nhwc(x_nhwc, wt, bt, wc, bc, tm=tm,
                       compute_dtype=compute_dtype, out_dtype=out_dtype)
    return jnp.transpose(y, (0, 3, 1, 2))


def _reference(x_nchw, wt, bt, wc, bc):
    """Pure-JAX f32 reference of ConvTranspose2d(2,2) -> ReLU -> Conv2d(1x1)."""
    N, C, H, W = x_nchw.shape
    D = wt.shape[1]
    # out[n, d, 2i+a, 2j+b] = sum_c x[n, c, i, j] * wt[c, d, a, b] + bt[d]
    t = jnp.einsum("ncij,cdab->ndiajb", x_nchw, wt)
    t = t + bt[None, :, None, None, None, None]
    t = t.reshape(N, D, 2 * H, 2 * W)
    t = jnp.maximum(t, 0.0)
    out = jnp.einsum("ndyx,kd->nkyx", t, wc[:, :, 0, 0])
    return out + bc[None, :, None, None]


if __name__ == "__main__":
    # Small, deterministic shapes mirroring the real mask head (14x14 ROIs),
    # with channel dims scaled down; exercises the D/K/M padding paths and the
    # multi-step (grid >= 2) tiling path.
    N, C_in, H, W = 2, 32, 14, 14
    D = 32             # dim_reduced (real module uses 256)
    K = 91             # num_classes (module default)

    key = jax.random.PRNGKey(0)
    kx, kwt, kbt, kwc, kbc = jax.random.split(key, 5)
    x = jax.random.normal(kx, (N, C_in, H, W), dtype=jnp.float32)
    wt = jax.random.normal(kwt, (C_in, D, 2, 2), dtype=jnp.float32) * 0.05
    bt = jax.random.normal(kbt, (D,), dtype=jnp.float32) * 0.05
    wc = jax.random.normal(kwc, (K, D, 1, 1), dtype=jnp.float32) * 0.05
    bc = jax.random.normal(kbc, (K,), dtype=jnp.float32) * 0.05

    out = jax.jit(mask_rcnn_predictor_head)(x, wt, bt, wc, bc)
    out = jax.block_until_ready(out)

    ref = _reference(x, wt, bt, wc, bc)
    assert out.shape == (N, K, 2 * H, 2 * W), out.shape
    # bf16 MXU operands + bf16 output -> loosened tolerance vs f32 reference
    err = float(jnp.max(jnp.abs(out.astype(jnp.float32) - ref)))
    assert err < 5e-2, f"max abs error {err} vs f32 reference"

    print("KERNEL_OK")
</pallas_src>

<mosaic_0001>
module attributes {stable_mosaic.version = 11 : i64} {
  func.func @_mask_head_kernel(%arg0: i32, %arg1: memref<208x32xbf16, #tpu.memory_space<vmem>>, %arg2: memref<32x512xbf16, #tpu.memory_space<vmem>>, %arg3: memref<1x512xf32, #tpu.memory_space<vmem>>, %arg4: memref<128x128xbf16, #tpu.memory_space<vmem>>, %arg5: memref<1x128xf32, #tpu.memory_space<vmem>>, %arg6: memref<208x512xbf16, #tpu.memory_space<vmem>>) attributes {dimension_semantics = [#tpu.dimension_semantics<parallel>], iteration_bounds = array<i64: 2>, scalar_prefetch = 0 : i64, scratch_operands = 0 : i64, tpu.core_type = #tpu.core_type<tc>, window_params = [{transform_indices = @transform_0, window_bounds = array<i64: 208, 32>}, {pipeline_mode = #tpu.pipeline_mode<synchronous>, transform_indices = @transform_1, window_bounds = array<i64: 32, 512>}, {pipeline_mode = #tpu.pipeline_mode<synchronous>, transform_indices = @transform_2, window_bounds = array<i64: 1, 512>}, {pipeline_mode = #tpu.pipeline_mode<synchronous>, transform_indices = @transform_3, window_bounds = array<i64: 128, 128>}, {pipeline_mode = #tpu.pipeline_mode<synchronous>, transform_indices = @transform_4, window_bounds = array<i64: 1, 128>}, {transform_indices = @transform_5, window_bounds = array<i64: 208, 512>}]} {
    %c0 = arith.constant 0 : index
    %c0_0 = arith.constant 0 : index
    %0 = vector.load %arg1[%c0, %c0_0] : memref<208x32xbf16, #tpu.memory_space<vmem>>, vector<208x32xbf16>
    %c0_1 = arith.constant 0 : index
    %c0_2 = arith.constant 0 : index
    %1 = vector.load %arg4[%c0_1, %c0_2] : memref<128x128xbf16, #tpu.memory_space<vmem>>, vector<128x128xbf16>
    %c0_3 = arith.constant 0 : index
    %c0_4 = arith.constant 0 : index
    %2 = vector.load %arg5[%c0_3, %c0_4] : memref<1x128xf32, #tpu.memory_space<vmem>>, vector<1x128xf32>
    %c0_5 = arith.constant 0 : index
    %c0_6 = arith.constant 0 : index
    %3 = vector.load %arg2[%c0_5, %c0_6] : memref<32x512xbf16, #tpu.memory_space<vmem>>, vector<32x128xbf16>
    %cst = arith.constant dense<0.000000e+00> : vector<208x128xf32>
    %4 = tpu.matmul %0, %3, %cst {dimension_numbers = #tpu.dot_dimension_numbers<[1], [0], [0], [1], [0, 0, 1, 1], [], []>} : vector<208x32xbf16>, vector<32x128xbf16>, vector<208x128xf32> -> vector<208x128xf32>
    %c0_7 = arith.constant 0 : index
    %c0_8 = arith.constant 0 : index
    %5 = vector.load %arg3[%c0_7, %c0_8] : memref<1x512xf32, #tpu.memory_space<vmem>>, vector<1x128xf32>
    %6 = vector.broadcast %5 : vector<1x128xf32> to vector<208x128xf32>
    %7 = arith.addf %4, %6 : vector<208x128xf32>
    %cst_9 = arith.constant 0.000000e+00 : f32
    %8 = vector.broadcast %cst_9 : f32 to vector<208x128xf32>
    %9 = arith.maximumf %7, %8 : vector<208x128xf32>
    %10 = arith.truncf %9 : vector<208x128xf32> to vector<208x128xbf16>
    %cst_10 = arith.constant dense<0.000000e+00> : vector<208x128xf32>
    %11 = tpu.matmul %10, %1, %cst_10 {dimension_numbers = #tpu.dot_dimension_numbers<[1], [0], [0], [1], [0, 0, 1, 1], [], []>} : vector<208x128xbf16>, vector<128x128xbf16>, vector<208x128xf32> -> vector<208x128xf32>
    %12 = vector.broadcast %2 : vector<1x128xf32> to vector<208x128xf32>
    %13 = arith.addf %11, %12 : vector<208x128xf32>
    %14 = arith.truncf %13 : vector<208x128xf32> to vector<208x128xbf16>
    %c0_11 = arith.constant 0 : index
    %c0_12 = arith.constant 0 : index
    %15 = vector.load %arg6[%c0_11, %c0_12] : memref<208x512xbf16, #tpu.memory_space<vmem>>, vector<208x128xbf16>
    tpu.vector_store %arg6[%c0_11, %c0_12], %14 {strides = array<i32>} : memref<208x512xbf16, #tpu.memory_space<vmem>>, vector<208x128xbf16>,
    %c0_13 = arith.constant 0 : index
    %c128 = arith.constant 128 : index
    %16 = vector.load %arg2[%c0_13, %c128] : memref<32x512xbf16, #tpu.memory_space<vmem>>, vector<32x128xbf16>
    %cst_14 = arith.constant dense<0.000000e+00> : vector<208x128xf32>
    %17 = tpu.matmul %0, %16, %cst_14 {dimension_numbers = #tpu.dot_dimension_numbers<[1], [0], [0], [1], [0, 0, 1, 1], [], []>} : vector<208x32xbf16>, vector<32x128xbf16>, vector<208x128xf32> -> vector<208x128xf32>
    %c0_15 = arith.constant 0 : index
    %c128_16 = arith.constant 128 : index
    %18 = vector.load %arg3[%c0_15, %c128_16] : memref<1x512xf32, #tpu.memory_space<vmem>>, vector<1x128xf32>
    %19 = vector.broadcast %18 : vector<1x128xf32> to vector<208x128xf32>
    %20 = arith.addf %17, %19 : vector<208x128xf32>
    %cst_17 = arith.constant 0.000000e+00 : f32
    %21 = vector.broadcast %cst_17 : f32 to vector<208x128xf32>
    %22 = arith.maximumf %20, %21 : vector<208x128xf32>
    %23 = arith.truncf %22 : vector<208x128xf32> to vector<208x128xbf16>
    %cst_18 = arith.constant dense<0.000000e+00> : vector<208x128xf32>
    %24 = tpu.matmul %23, %1, %cst_18 {dimension_numbers = #tpu.dot_dimension_numbers<[1], [0], [0], [1], [0, 0, 1, 1], [], []>} : vector<208x128xbf16>, vector<128x128xbf16>, vector<208x128xf32> -> vector<208x128xf32>
    %25 = vector.broadcast %2 : vector<1x128xf32> to vector<208x128xf32>
    %26 = arith.addf %24, %25 : vector<208x128xf32>
    %27 = arith.truncf %26 : vector<208x128xf32> to vector<208x128xbf16>
    %c0_19 = arith.constant 0 : index
    %c128_20 = arith.constant 128 : index
    %28 = vector.load %arg6[%c0_19, %c128_20] : memref<208x512xbf16, #tpu.memory_space<vmem>>, vector<208x128xbf16>
    tpu.vector_store %arg6[%c0_19, %c128_20], %27 {strides = array<i32>} : memref<208x512xbf16, #tpu.memory_space<vmem>>, vector<208x128xbf16>,
    %c0_21 = arith.constant 0 : index
    %c256 = arith.constant 256 : index
    %29 = vector.load %arg2[%c0_21, %c256] : memref<32x512xbf16, #tpu.memory_space<vmem>>, vector<32x128xbf16>
    %cst_22 = arith.constant dense<0.000000e+00> : vector<208x128xf32>
    %30 = tpu.matmul %0, %29, %cst_22 {dimension_numbers = #tpu.dot_dimension_numbers<[1], [0], [0], [1], [0, 0, 1, 1], [], []>} : vector<208x32xbf16>, vector<32x128xbf16>, vector<208x128xf32> -> vector<208x128xf32>
    %c0_23 = arith.constant 0 : index
    %c256_24 = arith.constant 256 : index
    %31 = vector.load %arg3[%c0_23, %c256_24] : memref<1x512xf32, #tpu.memory_space<vmem>>, vector<1x128xf32>
    %32 = vector.broadcast %31 : vector<1x128xf32> to vector<208x128xf32>
    %33 = arith.addf %30, %32 : vector<208x128xf32>
    %cst_25 = arith.constant 0.000000e+00 : f32
    %34 = vector.broadcast %cst_25 : f32 to vector<208x128xf32>
    %35 = arith.maximumf %33, %34 : vector<208x128xf32>
    %36 = arith.truncf %35 : vector<208x128xf32> to vector<208x128xbf16>
    %cst_26 = arith.constant dense<0.000000e+00> : vector<208x128xf32>
    %37 = tpu.matmul %36, %1, %cst_26 {dimension_numbers = #tpu.dot_dimension_numbers<[1], [0], [0], [1], [0, 0, 1, 1], [], []>} : vector<208x128xbf16>, vector<128x128xbf16>, vector<208x128xf32> -> vector<208x128xf32>
    %38 = vector.broadcast %2 : vector<1x128xf32> to vector<208x128xf32>
    %39 = arith.addf %37, %38 : vector<208x128xf32>
    %40 = arith.truncf %39 : vector<208x128xf32> to vector<208x128xbf16>
    %c0_27 = arith.constant 0 : index
    %c256_28 = arith.constant 256 : index
    %41 = vector.load %arg6[%c0_27, %c256_28] : memref<208x512xbf16, #tpu.memory_space<vmem>>, vector<208x128xbf16>
    tpu.vector_store %arg6[%c0_27, %c256_28], %40 {strides = array<i32>} : memref<208x512xbf16, #tpu.memory_space<vmem>>, vector<208x128xbf16>,
    %c0_29 = arith.constant 0 : index
    %c384 = arith.constant 384 : index
    %42 = vector.load %arg2[%c0_29, %c384] : memref<32x512xbf16, #tpu.memory_space<vmem>>, vector<32x128xbf16>
    %cst_30 = arith.constant dense<0.000000e+00> : vector<208x128xf32>
    %43 = tpu.matmul %0, %42, %cst_30 {dimension_numbers = #tpu.dot_dimension_numbers<[1], [0], [0], [1], [0, 0, 1, 1], [], []>} : vector<208x32xbf16>, vector<32x128xbf16>, vector<208x128xf32> -> vector<208x128xf32>
    %c0_31 = arith.constant 0 : index
    %c384_32 = arith.constant 384 : index
    %44 = vector.load %arg3[%c0_31, %c384_32] : memref<1x512xf32, #tpu.memory_space<vmem>>, vector<1x128xf32>
    %45 = vector.broadcast %44 : vector<1x128xf32> to vector<208x128xf32>
    %46 = arith.addf %43, %45 : vector<208x128xf32>
    %cst_33 = arith.constant 0.000000e+00 : f32
    %47 = vector.broadcast %cst_33 : f32 to vector<208x128xf32>
    %48 = arith.maximumf %46, %47 : vector<208x128xf32>
    %49 = arith.truncf %48 : vector<208x128xf32> to vector<208x128xbf16>
    %cst_34 = arith.constant dense<0.000000e+00> : vector<208x128xf32>
    %50 = tpu.matmul %49, %1, %cst_34 {dimension_numbers = #tpu.dot_dimension_numbers<[1], [0], [0], [1], [0, 0, 1, 1], [], []>} : vector<208x128xbf16>, vector<128x128xbf16>, vector<208x128xf32> -> vector<208x128xf32>
    %51 = vector.broadcast %2 : vector<1x128xf32> to vector<208x128xf32>
    %52 = arith.addf %50, %51 : vector<208x128xf32>
    %53 = arith.truncf %52 : vector<208x128xf32> to vector<208x128xbf16>
    %c0_35 = arith.constant 0 : index
    %c384_36 = arith.constant 384 : index
    %54 = vector.load %arg6[%c0_35, %c384_36] : memref<208x512xbf16, #tpu.memory_space<vmem>>, vector<208x128xbf16>
    tpu.vector_store %arg6[%c0_35, %c384_36], %53 {strides = array<i32>} : memref<208x512xbf16, #tpu.memory_space<vmem>>, vector<208x128xbf16>,
    return
  }
  func.func @transform_0(%arg0: i32) -> (i32, i32) {
    %c0_i32 = arith.constant 0 : i32
    %c0_i32_0 = arith.constant 0 : i32
    return %arg0, %c0_i32 : i32, i32
  }
  func.func @transform_1(%arg0: i32) -> (i32, i32) {
    %c0_i32 = arith.constant 0 : i32
    %c0_i32_0 = arith.constant 0 : i32
    %c0_i32_1 = arith.constant 0 : i32
    return %c0_i32, %c0_i32_0 : i32, i32
  }
  func.func @transform_2(%arg0: i32) -> (i32, i32) {
    %c0_i32 = arith.constant 0 : i32
    %c0_i32_0 = arith.constant 0 : i32
    %c0_i32_1 = arith.constant 0 : i32
    return %c0_i32, %c0_i32_0 : i32, i32
  }
  func.func @transform_3(%arg0: i32) -> (i32, i32) {
    %c0_i32 = arith.constant 0 : i32
    %c0_i32_0 = arith.constant 0 : i32
    %c0_i32_1 = arith.constant 0 : i32
    return %c0_i32, %c0_i32_0 : i32, i32
  }
  func.func @transform_4(%arg0: i32) -> (i32, i32) {
    %c0_i32 = arith.constant 0 : i32
    %c0_i32_0 = arith.constant 0 : i32
    %c0_i32_1 = arith.constant 0 : i32
    return %c0_i32, %c0_i32_0 : i32, i32
  }
  func.func @transform_5(%arg0: i32) -> (i32, i32) {
    %c0_i32 = arith.constant 0 : i32
    %c0_i32_0 = arith.constant 0 : i32
    return %arg0, %c0_i32 : i32, i32
  }
}

</mosaic_0001>

<llo_original>
// kernel: tile.8
$region0: #{tile.8}
  #allocation0 [shape = 's32[1]{0}', space=sflag, size = 0x4, scoped, tag = 'scoped memory for tile.8']
  %s0 = inlined_call_operand.vmem [shape: f32[128], index: 0, kind: input, shape index: {}]
  %s1 = inlined_call_operand.vmem [shape: f32[4,128], index: 1, kind: output, shape index: {}]
  // Predicated region
  $region2: #{tile.8} parent=0 // pred_check
    _
  $region3: #{tile.8} parent=0 // pred_check_branch
    %3 = sbr.rel (0) target = $region5
  $region4: #{tile.8} parent=0 // pred_region
    _
  $region5: #{tile.8} parent=0 // pred_fallthru
    _
  %v4 = vld [vmem:[%s0] ss:$0 sm:$0xff]
  %5 = vst [vmem:[%s1] sm:$0xf] %v4

// kernel: mask_rcnn_predictor_head.1
$region0: #{mask_rcnn_predictor_head.1}
  #allocation0 [shape = 'u32[]', space=smem, size = 0x4, offset = 0x4, fixed_abs, tag = 'smem constant byte address 0x4 - core index']
  #allocation1 [shape = 'u32[144,128]{1,0:T(1,128)}', space=vmem, size = 0x12000, scoped, tag = 'internal scratch']
  %s0 = inlined_call_operand.vmem [shape: bf16[416,32], index: 0, kind: input, shape index: {}]
  %s1 = inlined_call_operand.vmem [shape: bf16[32,512], index: 1, kind: input, shape index: {}]
  %s2 = inlined_call_operand.vmem [shape: f32[1,512], index: 2, kind: input, shape index: {}]
  %s3 = inlined_call_operand.vmem [shape: bf16[128,128], index: 3, kind: input, shape index: {}]
  %s4 = inlined_call_operand.vmem [shape: f32[1,128], index: 4, kind: input, shape index: {}]
  %s5 = inlined_call_operand.vmem [shape: bf16[416,512], index: 5, kind: output, shape index: {}]
  %s6 = sld [smem:[#allocation0]]
  $region53: #{mask_rcnn_predictor_head.1} parent=0
    _
  %s8 = ssub.s32 1, %s6
  %s9 = scalar_select 0, %s8, %s6
  loop: start=0, step=1, limit=4
  $region2: #{mask_rcnn_predictor_head.1} parent=0 // loop_pre_header
    _
  $region3: #{mask_rcnn_predictor_head.1} parent=0 // loop_header
    %s11 = sphi 0, %s15
    %p12 = scmp.ge.s32.totalorder %s11, 4
    %s21 = sphi 0, %s23
    %s24 = sphi 0, %s21
    %s25 = sphi 0, %s24
    %s41 = sphi 0, %s25
    %s45 = sphi 0, %s45
    %s47 = sphi 0, %s45
    %s48 = sphi 0, %s47
    %s62 = sphi 0, %s48
    %s66 = sphi 0, %s66
    %s68 = sphi 0, %s66
    %s69 = sphi 0, %s68
    %s83 = sphi 0, %s69
    %s87 = sphi 0, %s87
    %s89 = sphi 0, %s87
    %s90 = sphi 0, %s89
    %s104 = sphi 0, %s90
    %s108 = sphi 0, %s108
    %s110 = sphi 0, %s108
    %s111 = sphi 0, %s110
    %s125 = sphi 0, %s111
    %s131 = sphi 0, %s133
    %s134 = sphi 0, %s131
    %s135 = sphi 0, %s134
    %s151 = sphi 0, %s135
  $region4: #{mask_rcnn_predictor_head.1} parent=0 // loop_header_branch
    %14 = sbr.rel (%p12) target = $region8
  $region5: #{mask_rcnn_predictor_head.1} parent=0 // loop_body
    %s16 = ssub.s32 %s11, 1
    %s17 = ssub.s32 %s11, 2
    %s18 = sadd.s32 %s11, 1
    %s19 = ssub.s32 %s11, %s18
    %p20 = scmp.eq.s32.totalorder %s19, 0
    %s22 = sadd.s32 %s21, 1
    %s23 = scalar_select %p20, %s21, %s22
    %p26 = pneg %p20
    %p27 = scmp.eq.s32.totalorder %s11, 1
    %p28 = por %p26, %p27
    %p29 = scmp.ne.s32.totalorder %s21, %s24
    %p30 = scmp.eq.s32.totalorder %s11, 0
    %p31 = por %p29, %p30
    %p32 = scmp.ne.s32.totalorder %s21, %s24
    %p33 = scmp.eq.s32.totalorder %s16, 1
    %p34 = por %p32, %p33
    %p35 = scmp.ne.s32.totalorder %s24, %s25
    %p36 = scmp.eq.s32.totalorder %s16, 0
    %p37 = por %p35, %p36
    %p38 = scmp.ne.s32.totalorder %s24, %s25
    %p39 = scmp.eq.s32.totalorder %s17, 1
    %p40 = por %p38, %p39
    %p42 = scmp.ne.s32.totalorder %s25, %s41
    %p43 = scmp.eq.s32.totalorder %s17, 0
    %p44 = por %p42, %p43
    %s46 = sadd.s32 %s45, 1
    %p49 = scmp.eq.s32.totalorder %s11, 1
    %p50 = scmp.ne.s32.totalorder %s45, %s47
    %p51 = scmp.eq.s32.totalorder %s11, 0
    %p52 = por %p50, %p51
    %p53 = scmp.ne.s32.totalorder %s45, %s47
    %p54 = scmp.eq.s32.totalorder %s16, 1
    %p55 = por %p53, %p54
    %p56 = scmp.ne.s32.totalorder %s47, %s48
    %p57 = scmp.eq.s32.totalorder %s16, 0
    %p58 = por %p56, %p57
    %p59 = scmp.ne.s32.totalorder %s47, %s48
    %p60 = scmp.eq.s32.totalorder %s17, 1
    %p61 = por %p59, %p60
    %p63 = scmp.ne.s32.totalorder %s48, %s62
    %p64 = scmp.eq.s32.totalorder %s17, 0
    %p65 = por %p63, %p64
    %s67 = sadd.s32 %s66, 1
    %p70 = scmp.eq.s32.totalorder %s11, 1
    %p71 = scmp.ne.s32.totalorder %s66, %s68
    %p72 = scmp.eq.s32.totalorder %s11, 0
    %p73 = por %p71, %p72
    %p74 = scmp.ne.s32.totalorder %s66, %s68
    %p75 = scmp.eq.s32.totalorder %s16, 1
    %p76 = por %p74, %p75
    %p77 = scmp.ne.s32.totalorder %s68, %s69
    %p78 = scmp.eq.s32.totalorder %s16, 0
    %p79 = por %p77, %p78
    %p80 = scmp.ne.s32.totalorder %s68, %s69
    %p81 = scmp.eq.s32.totalorder %s17, 1
    %p82 = por %p80, %p81
    %p84 = scmp.ne.s32.totalorder %s69, %s83
    %p85 = scmp.eq.s32.totalorder %s17, 0
    %p86 = por %p84, %p85
    %s88 = sadd.s32 %s87, 1
    %p91 = scmp.eq.s32.totalorder %s11, 1
    %p92 = scmp.ne.s32.totalorder %s87, %s89
    %p93 = scmp.eq.s32.totalorder %s11, 0
    %p94 = por %p92, %p93
    %p95 = scmp.ne.s32.totalorder %s87, %s89
    %p96 = scmp.eq.s32.totalorder %s16, 1
    %p97 = por %p95, %p96
    %p98 = scmp.ne.s32.totalorder %s89, %s90
    %p99 = scmp.eq.s32.totalorder %s16, 0
    %p100 = por %p98, %p99
    %p101 = scmp.ne.s32.totalorder %s89, %s90
    %p102 = scmp.eq.s32.totalorder %s17, 1
    %p103 = por %p101, %p102
    %p105 = scmp.ne.s32.totalorder %s90, %s104
    %p106 = scmp.eq.s32.totalorder %s17, 0
    %p107 = por %p105, %p106
    %s109 = sadd.s32 %s108, 1
    %p112 = scmp.eq.s32.totalorder %s11, 1
    %p113 = scmp.ne.s32.totalorder %s108, %s110
    %p114 = scmp.eq.s32.totalorder %s11, 0
    %p115 = por %p113, %p114
    %p116 = scmp.ne.s32.totalorder %s108, %s110
    %p117 = scmp.eq.s32.totalorder %s16, 1
    %p118 = por %p116, %p117
    %p119 = scmp.ne.s32.totalorder %s110, %s111
    %p120 = scmp.eq.s32.totalorder %s16, 0
    %p121 = por %p119, %p120
    %p122 = scmp.ne.s32.totalorder %s110, %s111
    %p123 = scmp.eq.s32.totalorder %s17, 1
    %p124 = por %p122, %p123
    %p126 = scmp.ne.s32.totalorder %s111, %s125
    %p127 = scmp.eq.s32.totalorder %s17, 0
    %p128 = por %p126, %p127
    %s129 = ssub.s32 %s11, %s18
    %p130 = scmp.eq.s32.totalorder %s129, 0
    %s132 = sadd.s32 %s131, 1
    %s133 = scalar_select %p130, %s131, %s132
    %p136 = pneg %p130
    %p137 = scmp.eq.s32.totalorder %s11, 1
    %p138 = por %p136, %p137
    %p139 = scmp.ne.s32.totalorder %s131, %s134
    %p140 = scmp.eq.s32.totalorder %s11, 0
    %p141 = por %p139, %p140
    %p142 = scmp.ne.s32.totalorder %s131, %s134
    %p143 = scmp.eq.s32.totalorder %s16, 1
    %p144 = por %p142, %p143
    %p145 = scmp.ne.s32.totalorder %s134, %s135
    %p146 = scmp.eq.s32.totalorder %s16, 0
    %p147 = por %p145, %p146
    %p148 = scmp.ne.s32.totalorder %s134, %s135
    %p149 = scmp.eq.s32.totalorder %s17, 1
    %p150 = por %p148, %p149
    %p152 = scmp.ne.s32.totalorder %s135, %s151
    %p153 = scmp.eq.s32.totalorder %s17, 0
    %p154 = por %p152, %p153
    %p155 = scmp.le.s32.totalorder 1, %s11
    %p156 = scmp.lt.s32.totalorder %s11, 3
    %p157 = pnand %p155, %p156
    %p158 = pneg %p157
    // Predicated region
    $region9: #{mask_rcnn_predictor_head.1} parent=5 // pred_check
      _
    $region10: #{mask_rcnn_predictor_head.1} parent=5 // pred_check_branch
      %160 = sbr.rel (%p157) target = $region12
    $region11: #{mask_rcnn_predictor_head.1} parent=5 // pred_region
      %s161 = ssub.s32 %s11, 1
      // Predicated region
      $region13: #{mask_rcnn_predictor_head.1} parent=11 // pred_check
        %p162 = pneg %p58
      $region14: #{mask_rcnn_predictor_head.1} parent=11 // pred_check_branch
        %164 = sbr.rel (%p162) target = $region16
      $region15: #{mask_rcnn_predictor_head.1} parent=11 // pred_region
        _
      $region16: #{mask_rcnn_predictor_head.1} parent=11 // pred_fallthru
        _
      // Predicated region
      $region17: #{mask_rcnn_predictor_head.1} parent=11 // pred_check
        %p165 = pneg %p79
      $region18: #{mask_rcnn_predictor_head.1} parent=11 // pred_check_branch
        %167 = sbr.rel (%p165) target = $region20
      $region19: #{mask_rcnn_predictor_head.1} parent=11 // pred_region
        _
      $region20: #{mask_rcnn_predictor_head.1} parent=11 // pred_fallthru
        _
      // Predicated region
      $region21: #{mask_rcnn_predictor_head.1} parent=11 // pred_check
        %p168 = pneg %p100
      $region22: #{mask_rcnn_predictor_head.1} parent=11 // pred_check_branch
        %170 = sbr.rel (%p168) target = $region24
      $region23: #{mask_rcnn_predictor_head.1} parent=11 // pred_region
        _
      $region24: #{mask_rcnn_predictor_head.1} parent=11 // pred_fallthru
        _
      // Predicated region
      $region25: #{mask_rcnn_predictor_head.1} parent=11 // pred_check
        %p171 = pneg %p121
      $region26: #{mask_rcnn_predictor_head.1} parent=11 // pred_check_branch
        %173 = sbr.rel (%p171) target = $region28
      $region27: #{mask_rcnn_predictor_head.1} parent=11 // pred_region
        _
      $region28: #{mask_rcnn_predictor_head.1} parent=11 // pred_fallthru
        _
    $region12: #{mask_rcnn_predictor_head.1} parent=5 // pred_fallthru
      _
    %p174 = scmp.lt.s32.totalorder %s11, 2
    // Predicated region
    $region29: #{mask_rcnn_predictor_head.1} parent=5 // pred_check
      %p175 = pneg %p174
    $region30: #{mask_rcnn_predictor_head.1} parent=5 // pred_check_branch
      %177 = sbr.rel (%p175) target = $region32
    $region31: #{mask_rcnn_predictor_head.1} parent=5 // pred_region
      // Predicated region
      $region33: #{mask_rcnn_predictor_head.1} parent=31 // pred_check
        %p178 = pneg %p31
      $region34: #{mask_rcnn_predictor_head.1} parent=31 // pred_check_branch
        %180 = sbr.rel (%p178) target = $region36
      $region35: #{mask_rcnn_predictor_head.1} parent=31 // pred_region
        %s181 = smul.u32 26, %s11
        %p182 = scmp.lt.s32.totalorder %s181, 51
        %s183 = scalar_select %p182, %s181, 51
        %s184 = smul.addr %s183, 4
        %s185 = scalar_lea.vmem %s0, %s184
        %s186 = smul.u32 26, %s11
      $region36: #{mask_rcnn_predictor_head.1} parent=31 // pred_fallthru
        _
    $region32: #{mask_rcnn_predictor_head.1} parent=5 // pred_fallthru
      _
    %p187 = scmp.le.s32.totalorder 1, %s11
    %p188 = scmp.lt.s32.totalorder %s11, 3
    %p189 = pnand %p187, %p188
    %p190 = pneg %p189
    // Predicated region
    $region37: #{mask_rcnn_predictor_head.1} parent=5 // pred_check
      _
    $region38: #{mask_rcnn_predictor_head.1} parent=5 // pred_check_branch
      %192 = sbr.rel (%p189) target = $region40
    $region39: #{mask_rcnn_predictor_head.1} parent=5 // pred_region
      %s193 = ssub.s32 %s11, 1
      %s194 = smul.u32 26, %s16
      %p195 = scmp.lt.s32.totalorder %s194, 51
      %s196 = scalar_select %p195, %s194, 51
      %s197 = smul.addr %s196, 4
      %s198 = scalar_lea.vmem %s0, %s197
      %p199 = pneg %p37
      %p200 = pneg %p34
      %p201 = pneg %p58
      %p202 = pneg %p55
      %p203 = pneg %p79
      %p204 = pneg %p76
      %p205 = pneg %p100
      %p206 = pneg %p97
      %p207 = pneg %p121
      %p208 = pneg %p118
      %p209 = pneg %p147
      %p210 = pneg %p144
      %s211 = smul.u32 26, %s16
      %p212 = scmp.lt.s32.totalorder %s211, 51
      %s213 = scalar_select %p212, %s211, 51
      %s214 = smul.addr %s213, 4
      %s215 = smul.addr %s214, 4
      %s216 = scalar_lea.vmem %s5, %s215
      %s217 = smul.u32 26, %s16
      %p218 = scmp.lt.s32.totalorder %s217, 51
      %s219 = scalar_select %p218, %s217, 51
      %s220 = smul.addr %s219, 4
      %s221 = scalar_lea.vmem %s0, %s220
      %s222 = smul.u32 26, %s16
      %s223 = smul.u32 26, %s16
      %p224 = scmp.lt.s32.totalorder %s223, 51
      %s225 = scalar_select %p224, %s223, 51
      %s226 = smul.addr %s225, 4
      %s227 = smul.addr %s226, 4
      %s228 = scalar_lea.vmem %s5, %s227
      %s229 = smul.u32 26, %s16
      %v231 = vld [vmem:[%s221] sm:$0xf]
      %v232 = vld [vmem:[%s221 + $0x4] sm:$0xf]
      %v233 = vld [vmem:[%s221 + $0x8] sm:$0xf]
      %v234 = vld [vmem:[%s221 + $0xc] sm:$0xf]
      %v235 = vld [vmem:[%s221 + $0x10] sm:$0xf]
      %v236 = vld [vmem:[%s221 + $0x14] sm:$0xf]
      %v237 = vld [vmem:[%s221 + $0x18] sm:$0xf]
      %v238 = vld [vmem:[%s221 + $0x1c] sm:$0xf]
      %v239 = vld [vmem:[%s221 + $0x20] sm:$0xf]
      %v240 = vld [vmem:[%s221 + $0x24] sm:$0xf]
      %v241 = vld [vmem:[%s221 + $0x28] sm:$0xf]
      %v242 = vld [vmem:[%s221 + $0x2c] sm:$0xf]
      %v243 = vld [vmem:[%s221 + $0x30] sm:$0xf]
      %v244 = vld [vmem:[%s221 + $0x34] sm:$0xf]
      %v245 = vld [vmem:[%s221 + $0x38] sm:$0xf]
      %v246 = vld [vmem:[%s221 + $0x3c] sm:$0xf]
      %v247 = vld [vmem:[%s221 + $0x40] sm:$0xf]
      %v248 = vld [vmem:[%s221 + $0x44] sm:$0xf]
      %v249 = vld [vmem:[%s221 + $0x48] sm:$0xf]
      %v250 = vld [vmem:[%s221 + $0x4c] sm:$0xf]
      %v251 = vld [vmem:[%s221 + $0x50] sm:$0xf]
      %v252 = vld [vmem:[%s221 + $0x54] sm:$0xf]
      %v253 = vld [vmem:[%s221 + $0x58] sm:$0xf]
      %v254 = vld [vmem:[%s221 + $0x5c] sm:$0xf]
      %v255 = vld [vmem:[%s221 + $0x60] sm:$0xf]
      %v256 = vld [vmem:[%s221 + $0x64] sm:$0xf]
      %v257 = vld [vmem:[%s3] sm:$0xf]
      %v258 = vld [vmem:[%s3 + $0x4] sm:$0xf]
      %v259 = vld [vmem:[%s3 + $0x8] sm:$0xf]
      %v260 = vld [vmem:[%s3 + $0xc] sm:$0xf]
      %v261 = vld [vmem:[%s3 + $0x10] sm:$0xf]
      %v262 = vld [vmem:[%s3 + $0x14] sm:$0xf]
      %v263 = vld [vmem:[%s3 + $0x18] sm:$0xf]
      %v264 = vld [vmem:[%s3 + $0x1c] sm:$0xf]
      %v265 = vld [vmem:[%s3 + $0x20] sm:$0xf]
      %v266 = vld [vmem:[%s3 + $0x24] sm:$0xf]
      %v267 = vld [vmem:[%s3 + $0x28] sm:$0xf]
      %v268 = vld [vmem:[%s3 + $0x2c] sm:$0xf]
      %v269 = vld [vmem:[%s3 + $0x30] sm:$0xf]
      %v270 = vld [vmem:[%s3 + $0x34] sm:$0xf]
      %v271 = vld [vmem:[%s3 + $0x38] sm:$0xf]
      %v272 = vld [vmem:[%s3 + $0x3c] sm:$0xf]
      %v273 = vld [vmem:[%s4] sm:$0x1]
      %v274 = vld [vmem:[%s1] sm:$0xf]
      %v275 = vld [vmem:[%s1 + $0x10] sm:$0xf]
      %v276 = vld [vmem:[%s1 + $0x20] sm:$0xf]
      %v277 = vld [vmem:[%s1 + $0x30] sm:$0xf]
      %v278 = vld [vmem:[%s2] sm:$0x1]
      %v280 = vlaneseq
      %v281 = vshrl.u32 %v280, 7
      %v282 = vsub.s32 0, %v281
      %v283 = vrot.slane %v278, %v282
      %v311 = vunpack.c.l.b16 %v231
      %v312 = vunpack.c.l.b16 %v232
      %v313 = vunpack.c.l.b16 %v233
      %v314 = vunpack.c.l.b16 %v234
      %v315 = vunpack.c.l.b16 %v235
      %v316 = vunpack.c.l.b16 %v236
      %v317 = vunpack.c.l.b16 %v237
      %v318 = vunpack.c.l.b16 %v238
      %v319 = vunpack.c.l.b16 %v239
      %v320 = vunpack.c.l.b16 %v240
      %v321 = vunpack.c.l.b16 %v241
      %v322 = vunpack.c.l.b16 %v242
      %v323 = vunpack.c.l.b16 %v243
      %v324 = vunpack.c.l.b16 %v244
      %v325 = vunpack.c.l.b16 %v245
      %v326 = vunpack.c.l.b16 %v246
      %v327 = vunpack.c.l.b16 %v247
      %v328 = vunpack.c.l.b16 %v248
      %v329 = vunpack.c.l.b16 %v249
      %v330 = vunpack.c.l.b16 %v250
      %v331 = vunpack.c.l.b16 %v251
      %v332 = vunpack.c.l.b16 %v252
      %v333 = vunpack.c.l.b16 %v253
      %v334 = vunpack.c.l.b16 %v254
      %v335 = vunpack.c.l.b16 %v255
      %v336 = vunpack.c.l.b16 %v256
      %v337 = vpack.c.b16 %v312, %v311
      %v338 = vpack.c.b16 %v314, %v313
      %v339 = vpack.c.b16 %v316, %v315
      %v340 = vpack.c.b16 %v318, %v317
      %v341 = vpack.c.b16 %v320, %v319
      %v342 = vpack.c.b16 %v322, %v321
      %v343 = vpack.c.b16 %v324, %v323
      %v344 = vpack.c.b16 %v326, %v325
      %v345 = vpack.c.b16 %v328, %v327
      %v346 = vpack.c.b16 %v330, %v329
      %v347 = vpack.c.b16 %v332, %v331
      %v348 = vpack.c.b16 %v334, %v333
      %v349 = vpack.c.b16 %v336, %v335
      %v354 = vunpack.c.l.b16 %v274
      %v355 = vunpack.c.l.b16 %v275
      %v356 = vunpack.c.l.b16 %v276
      %v357 = vunpack.c.l.b16 %v277
      %v358 = vpack.c.b16 %v355, %v354
      %v359 = vpack.c.b16 %v357, %v356
      %vm362 = vcmask 261120
      %v364 = vsel %vm362, %v337, 0
      %v367 = vsel %vm362, %v338, 0
      %v370 = vsel %vm362, %v339, 0
      %v373 = vsel %vm362, %v340, 0
      %v376 = vsel %vm362, %v341, 0
      %v379 = vsel %vm362, %v342, 0
      %v382 = vsel %vm362, %v343, 0
      %v385 = vsel %vm362, %v344, 0
      %v388 = vsel %vm362, %v345, 0
      %v391 = vsel %vm362, %v346, 0
      %v394 = vsel %vm362, %v347, 0
      %v397 = vsel %vm362, %v348, 0
      %v400 = vsel %vm362, %v349, 0
      %402 = vmatprep.subr.bf16.mxu0 0
      %403 = vmatpush1.bf16.msra.mxu0 0
      %404 = vmatprep.subr.bf16.mxu0 0
      %405 = vmatpush1.bf16.msra.mxu0 0
      %406 = vmatprep.subr.bf16.mxu0 0
      %407 = vmatpush1.bf16.msra.mxu0 0
      %408 = vmatprep.subr.bf16.mxu0 0
      %409 = vmatpush1.bf16.msra.mxu0 0
      %410 = vmatprep.subr.bf16.mxu0 0
      %411 = vmatpush1.bf16.msra.mxu0 0
      %412 = vmatprep.subr.bf16.mxu0 0
      %413 = vmatpush1.bf16.msra.mxu0 0
      %414 = vmatprep.subr.bf16.mxu0 0
      %415 = vmatpush1.bf16.msra.mxu0 %v359
      %416 = vmatprep.subr.bf16.mxu0 0
      %417 = vmatpush1.bf16.msra.mxu0 %v358
      %418 = vmatprep.subr.bf16.mxu0 0
      %419 = vmatpush2.bf16.msra.mxu0 0
      %420 = vmatprep.subr.bf16.mxu0 0
      %421 = vmatpush2.bf16.msra.mxu0 0
      %422 = vmatprep.subr.bf16.mxu0 0
      %423 = vmatpush2.bf16.msra.mxu0 0
      %424 = vmatprep.subr.bf16.mxu0 0
      %425 = vmatpush2.bf16.msra.mxu0 0
      %426 = vmatprep.subr.bf16.mxu0 0
      %427 = vmatpush2.bf16.msra.mxu0 0
      %428 = vmatprep.subr.bf16.mxu0 0
      %429 = vmatpush2.bf16.msra.mxu0 0
      %430 = vmatprep.subr.bf16.mxu0 0
      %431 = vmatpush2.bf16.msra.mxu0 0
      %432 = vmatprep.subr.bf16.mxu0 0
      %433 = vmatpush2.bf16.msra.mxu0 0
      %434 = vmatprep.mubr.bf16.mxu0 0
      %435 = vmatmul.mubr.bf16.gmra.mxu0 %v364
      %v436 = vpop.f32.mrf.mxu0
      %v437 = vadd.f32 %v283, %v436
      %v438 = vpop.f32.mrf.mxu0
      %v439 = vpop.f32.mrf.mxu0
      %v440 = vadd.f32 %v283, %v439
      %v441 = vpop.f32.mrf.mxu0
      %442 = vmatprep.mubr.bf16.mxu0 0
      %443 = vmatmul.mubr.bf16.gmra.mxu0 %v367
      %v444 = vpop.f32.mrf.mxu0
      %v445 = vadd.f32 %v283, %v444
      %v446 = vpop.f32.mrf.mxu0
      %v447 = vpop.f32.mrf.mxu0
      %v448 = vadd.f32 %v283, %v447
      %v449 = vpop.f32.mrf.mxu0
      %450 = vmatprep.mubr.bf16.mxu0 0
      %451 = vmatmul.mubr.bf16.gmra.mxu0 %v370
      %v452 = vpop.f32.mrf.mxu0
      %v453 = vadd.f32 %v283, %v452
      %v454 = vpop.f32.mrf.mxu0
      %v455 = vpop.f32.mrf.mxu0
      %v456 = vadd.f32 %v283, %v455
      %v457 = vpop.f32.mrf.mxu0
      %458 = vmatprep.mubr.bf16.mxu0 0
      %459 = vmatmul.mubr.bf16.gmra.mxu0 %v373
      %v460 = vpop.f32.mrf.mxu0
      %v461 = vadd.f32 %v283, %v460
      %v462 = vpop.f32.mrf.mxu0
      %v463 = vpop.f32.mrf.mxu0
      %v464 = vadd.f32 %v283, %v463
      %v465 = vpop.f32.mrf.mxu0
      %466 = vmatprep.mubr.bf16.mxu0 0
      %467 = vmatmul.mubr.bf16.gmra.mxu0 %v376
      %v468 = vpop.f32.mrf.mxu0
      %v469 = vadd.f32 %v283, %v468
      %v470 = vpop.f32.mrf.mxu0
      %v471 = vpop.f32.mrf.mxu0
      %v472 = vadd.f32 %v283, %v471
      %v473 = vpop.f32.mrf.mxu0
      %474 = vmatprep.mubr.bf16.mxu0 0
      %475 = vmatmul.mubr.bf16.gmra.mxu0 %v379
      %v476 = vpop.f32.mrf.mxu0
      %v477 = vadd.f32 %v283, %v476
      %v478 = vpop.f32.mrf.mxu0
      %v479 = vpop.f32.mrf.mxu0
      %v480 = vadd.f32 %v283, %v479
      %v481 = vpop.f32.mrf.mxu0
      %482 = vmatprep.mubr.bf16.mxu0 0
      %483 = vmatmul.mubr.bf16.gmra.mxu0 %v382
      %v484 = vpop.f32.mrf.mxu0
      %v485 = vadd.f32 %v283, %v484
      %v486 = vpop.f32.mrf.mxu0
      %v487 = vpop.f32.mrf.mxu0
      %v488 = vadd.f32 %v283, %v487
      %v489 = vpop.f32.mrf.mxu0
      %490 = vmatprep.mubr.bf16.mxu0 0
      %491 = vmatmul.mubr.bf16.gmra.mxu0 %v385
      %v492 = vpop.f32.mrf.mxu0
      %v493 = vadd.f32 %v283, %v492
      %v494 = vpop.f32.mrf.mxu0
      %v495 = vpop.f32.mrf.mxu0
      %v496 = vadd.f32 %v283, %v495
      %v497 = vpop.f32.mrf.mxu0
      %498 = vmatprep.mubr.bf16.mxu0 0
      %499 = vmatmul.mubr.bf16.gmra.mxu0 %v388
      %v500 = vpop.f32.mrf.mxu0
      %v501 = vadd.f32 %v283, %v500
      %v502 = vpop.f32.mrf.mxu0
      %v503 = vpop.f32.mrf.mxu0
      %v504 = vadd.f32 %v283, %v503
      %v505 = vpop.f32.mrf.mxu0
      %506 = vmatprep.mubr.bf16.mxu0 0
      %507 = vmatmul.mubr.bf16.gmra.mxu0 %v391
      %v508 = vpop.f32.mrf.mxu0
      %v509 = vadd.f32 %v283, %v508
      %v510 = vpop.f32.mrf.mxu0
      %v511 = vpop.f32.mrf.mxu0
      %v512 = vadd.f32 %v283, %v511
      %v513 = vpop.f32.mrf.mxu0
      %514 = vmatprep.mubr.bf16.mxu0 0
      %515 = vmatmul.mubr.bf16.gmra.mxu0 %v394
      %v516 = vpop.f32.mrf.mxu0
      %v517 = vadd.f32 %v283, %v516
      %v518 = vpop.f32.mrf.mxu0
      %v519 = vpop.f32.mrf.mxu0
      %v520 = vadd.f32 %v283, %v519
      %v521 = vpop.f32.mrf.mxu0
      %522 = vmatprep.mubr.bf16.mxu0 0
      %523 = vmatmul.mubr.bf16.gmra.mxu0 %v397
      %v524 = vpop.f32.mrf.mxu0
      %v525 = vadd.f32 %v283, %v524
      %v526 = vpop.f32.mrf.mxu0
      %v527 = vpop.f32.mrf.mxu0
      %v528 = vadd.f32 %v283, %v527
      %v529 = vpop.f32.mrf.mxu0
      %530 = vmatprep.mubr.bf16.mxu0 0
      %531 = vmatmul.mubr.bf16.gmra.mxu0 %v400
      %v532 = vpop.f32.mrf.mxu0
      %v533 = vadd.f32 %v283, %v532
      %v534 = vpop.f32.mrf.mxu0
      %v535 = vpop.f32.mrf.mxu0
      %v536 = vadd.f32 %v283, %v535
      %v537 = vpop.f32.mrf.mxu0
      %538 = vdwg.mxu0
      %v539 = vmax.f32 %v437, 0.0
      %v540 = vmax.f32 %v440, 0.0
      %v541 = vmax.f32 %v445, 0.0
      %v542 = vmax.f32 %v448, 0.0
      %v543 = vmax.f32 %v453, 0.0
      %v544 = vmax.f32 %v456, 0.0
      %v545 = vmax.f32 %v461, 0.0
      %v546 = vmax.f32 %v464, 0.0
      %v547 = vmax.f32 %v469, 0.0
      %v548 = vmax.f32 %v472, 0.0
      %v549 = vmax.f32 %v477, 0.0
      %v550 = vmax.f32 %v480, 0.0
      %v551 = vmax.f32 %v485, 0.0
      %v552 = vmax.f32 %v488, 0.0
      %v553 = vmax.f32 %v493, 0.0
      %v554 = vmax.f32 %v496, 0.0
      %v555 = vmax.f32 %v501, 0.0
      %v556 = vmax.f32 %v504, 0.0
      %v557 = vmax.f32 %v509, 0.0
      %v558 = vmax.f32 %v512, 0.0
      %v559 = vmax.f32 %v517, 0.0
      %v560 = vmax.f32 %v520, 0.0
      %v561 = vmax.f32 %v525, 0.0
      %v562 = vmax.f32 %v528, 0.0
      %v563 = vmax.f32 %v533, 0.0
      %v564 = vmax.f32 %v536, 0.0
      %v565 = vpack.c.bf16 %v540, %v539
      %v566 = vpack.c.bf16 %v542, %v541
      %v567 = vpack.c.bf16 %v544, %v543
      %v568 = vpack.c.bf16 %v546, %v545
      %v569 = vpack.c.bf16 %v548, %v547
      %v570 = vpack.c.bf16 %v550, %v549
      %v571 = vpack.c.bf16 %v552, %v551
      %v572 = vpack.c.bf16 %v554, %v553
      %v573 = vpack.c.bf16 %v556, %v555
      %v574 = vpack.c.bf16 %v558, %v557
      %v575 = vpack.c.bf16 %v560, %v559
      %v576 = vpack.c.bf16 %v562, %v561
      %v577 = vpack.c.bf16 %v564, %v563
      %v579 = vlaneseq
      %v580 = vshrl.u32 %v579, 7
      %v581 = vsub.s32 0, %v580
      %v582 = vrot.slane %v273, %v581
      %v600 = vunpack.c.l.b16 %v257
      %v601 = vunpack.c.l.b16 %v258
      %v602 = vunpack.c.l.b16 %v259
      %v603 = vunpack.c.l.b16 %v260
      %v604 = vunpack.c.l.b16 %v261
      %v605 = vunpack.c.l.b16 %v262
      %v606 = vunpack.c.l.b16 %v263
      %v607 = vunpack.c.l.b16 %v264
      %v608 = vunpack.c.l.b16 %v265
      %v609 = vunpack.c.l.b16 %v266
      %v610 = vunpack.c.l.b16 %v267
      %v611 = vunpack.c.l.b16 %v268
      %v612 = vunpack.c.l.b16 %v269
      %v613 = vunpack.c.l.b16 %v270
      %v614 = vunpack.c.l.b16 %v271
      %v615 = vunpack.c.l.b16 %v272
      %v616 = vpack.c.b16 %v601, %v600
      %v617 = vpack.c.b16 %v603, %v602
      %v618 = vpack.c.b16 %v605, %v604
      %v619 = vpack.c.b16 %v607, %v606
      %v620 = vpack.c.b16 %v609, %v608
      %v621 = vpack.c.b16 %v611, %v610
      %v622 = vpack.c.b16 %v613, %v612
      %v623 = vpack.c.b16 %v615, %v614
      %632 = vmatprep.subr.bf16.mxu0 0
      %633 = vmatpush1.bf16.msra.mxu0 %v623
      %634 = vmatprep.subr.bf16.mxu0 0
      %635 = vmatpush1.bf16.msra.mxu0 %v622
      %636 = vmatprep.subr.bf16.mxu0 0
      %637 = vmatpush1.bf16.msra.mxu0 %v621
      %638 = vmatprep.subr.bf16.mxu0 0
      %639 = vmatpush1.bf16.msra.mxu0 %v620
      %640 = vmatprep.subr.bf16.mxu0 0
      %641 = vmatpush1.bf16.msra.mxu0 %v619
      %642 = vmatprep.subr.bf16.mxu0 0
      %643 = vmatpush1.bf16.msra.mxu0 %v618
      %644 = vmatprep.subr.bf16.mxu0 0
      %645 = vmatpush1.bf16.msra.mxu0 %v617
      %646 = vmatprep.subr.bf16.mxu0 0
      %647 = vmatpush1.bf16.msra.mxu0 %v616
      %648 = vmatprep.subr.bf16.mxu0 0
      %649 = vmatpush2.bf16.msra.mxu0 0
      %650 = vmatprep.subr.bf16.mxu0 0
      %651 = vmatpush2.bf16.msra.mxu0 0
      %652 = vmatprep.subr.bf16.mxu0 0
      %653 = vmatpush2.bf16.msra.mxu0 0
      %654 = vmatprep.subr.bf16.mxu0 0
      %655 = vmatpush2.bf16.msra.mxu0 0
      %656 = vmatprep.subr.bf16.mxu0 0
      %657 = vmatpush2.bf16.msra.mxu0 0
      %658 = vmatprep.subr.bf16.mxu0 0
      %659 = vmatpush2.bf16.msra.mxu0 0
      %660 = vmatprep.subr.bf16.mxu0 0
      %661 = vmatpush2.bf16.msra.mxu0 0
      %662 = vmatprep.subr.bf16.mxu0 0
      %663 = vmatpush2.bf16.msra.mxu0 0
      %664 = vmatprep.mubr.bf16.mxu0 0
      %665 = vmatmul.mubr.bf16.gmra.mxu0 %v565
      %v666 = vpop.f32.mrf.mxu0
      %v667 = vadd.f32 %v582, %v666
      %v668 = vpop.f32.mrf.mxu0
      %v669 = vpop.f32.mrf.mxu0
      %v670 = vadd.f32 %v582, %v669
      %v671 = vpop.f32.mrf.mxu0
      %672 = vmatprep.mubr.bf16.mxu0 0
      %673 = vmatmul.mubr.bf16.gmra.mxu0 %v566
      %v674 = vpop.f32.mrf.mxu0
      %v675 = vadd.f32 %v582, %v674
      %v676 = vpop.f32.mrf.mxu0
      %v677 = vpop.f32.mrf.mxu0
      %v678 = vadd.f32 %v582, %v677
      %v679 = vpop.f32.mrf.mxu0
      %680 = vmatprep.mubr.bf16.mxu0 0
      %681 = vmatmul.mubr.bf16.gmra.mxu0 %v567
      %v682 = vpop.f32.mrf.mxu0
      %v683 = vadd.f32 %v582, %v682
      %v684 = vpop.f32.mrf.mxu0
      %v685 = vpop.f32.mrf.mxu0
      %v686 = vadd.f32 %v582, %v685
      %v687 = vpop.f32.mrf.mxu0
      %688 = vmatprep.mubr.bf16.mxu0 0
      %689 = vmatmul.mubr.bf16.gmra.mxu0 %v568
      %v690 = vpop.f32.mrf.mxu0
      %v691 = vadd.f32 %v582, %v690
      %v692 = vpop.f32.mrf.mxu0
      %v693 = vpop.f32.mrf.mxu0
      %v694 = vadd.f32 %v582, %v693
      %v695 = vpop.f32.mrf.mxu0
      %696 = vmatprep.mubr.bf16.mxu0 0
      %697 = vmatmul.mubr.bf16.gmra.mxu0 %v569
      %v698 = vpop.f32.mrf.mxu0
      %v699 = vadd.f32 %v582, %v698
      %v700 = vpop.f32.mrf.mxu0
      %v701 = vpop.f32.mrf.mxu0
      %v702 = vadd.f32 %v582, %v701
      %v703 = vpop.f32.mrf.mxu0
      %704 = vmatprep.mubr.bf16.mxu0 0
      %705 = vmatmul.mubr.bf16.gmra.mxu0 %v570
      %v706 = vpop.f32.mrf.mxu0
      %v707 = vadd.f32 %v582, %v706
      %v708 = vpop.f32.mrf.mxu0
      %v709 = vpop.f32.mrf.mxu0
      %v710 = vadd.f32 %v582, %v709
      %v711 = vpop.f32.mrf.mxu0
      %712 = vmatprep.mubr.bf16.mxu0 0
      %713 = vmatmul.mubr.bf16.gmra.mxu0 %v571
      %v714 = vpop.f32.mrf.mxu0
      %v715 = vadd.f32 %v582, %v714
      %v716 = vpop.f32.mrf.mxu0
      %v717 = vpop.f32.mrf.mxu0
      %v718 = vadd.f32 %v582, %v717
      %v719 = vpop.f32.mrf.mxu0
      %720 = vmatprep.mubr.bf16.mxu0 0
      %721 = vmatmul.mubr.bf16.gmra.mxu0 %v572
      %v722 = vpop.f32.mrf.mxu0
      %v723 = vadd.f32 %v582, %v722
      %v724 = vpop.f32.mrf.mxu0
      %v725 = vpop.f32.mrf.mxu0
      %v726 = vadd.f32 %v582, %v725
      %v727 = vpop.f32.mrf.mxu0
      %728 = vmatprep.mubr.bf16.mxu0 0
      %729 = vmatmul.mubr.bf16.gmra.mxu0 %v573
      %v730 = vpop.f32.mrf.mxu0
      %v731 = vadd.f32 %v582, %v730
      %v732 = vpop.f32.mrf.mxu0
      %v733 = vpop.f32.mrf.mxu0
      %v734 = vadd.f32 %v582, %v733
      %v735 = vpop.f32.mrf.mxu0
      %736 = vmatprep.mubr.bf16.mxu0 0
      %737 = vmatmul.mubr.bf16.gmra.mxu0 %v574
      %v738 = vpop.f32.mrf.mxu0
      %v739 = vadd.f32 %v582, %v738
      %v740 = vpop.f32.mrf.mxu0
      %v741 = vpop.f32.mrf.mxu0
      %v742 = vadd.f32 %v582, %v741
      %v743 = vpop.f32.mrf.mxu0
      %744 = vmatprep.mubr.bf16.mxu0 0
      %745 = vmatmul.mubr.bf16.gmra.mxu0 %v575
      %v746 = vpop.f32.mrf.mxu0
      %v747 = vadd.f32 %v582, %v746
      %v748 = vpop.f32.mrf.mxu0
      %v749 = vpop.f32.mrf.mxu0
      %v750 = vadd.f32 %v582, %v749
      %v751 = vpop.f32.mrf.mxu0
      %752 = vmatprep.mubr.bf16.mxu0 0
      %753 = vmatmul.mubr.bf16.gmra.mxu0 %v576
      %v754 = vpop.f32.mrf.mxu0
      %v755 = vadd.f32 %v582, %v754
      %v756 = vpop.f32.mrf.mxu0
      %v757 = vpop.f32.mrf.mxu0
      %v758 = vadd.f32 %v582, %v757
      %v759 = vpop.f32.mrf.mxu0
      %760 = vmatprep.mubr.bf16.mxu0 0
      %761 = vmatmul.mubr.bf16.gmra.mxu0 %v577
      %v762 = vpop.f32.mrf.mxu0
      %v763 = vadd.f32 %v582, %v762
      %v764 = vpop.f32.mrf.mxu0
      %v765 = vpop.f32.mrf.mxu0
      %v766 = vadd.f32 %v582, %v765
      %v767 = vpop.f32.mrf.mxu0
      %768 = vdwg.mxu0
      %v769 = vpack.c.bf16 %v670, %v667
      %v770 = vpack.c.bf16 %v678, %v675
      %v771 = vpack.c.bf16 %v686, %v683
      %v772 = vpack.c.bf16 %v694, %v691
      %v773 = vpack.c.bf16 %v702, %v699
      %v774 = vpack.c.bf16 %v710, %v707
      %v775 = vpack.c.bf16 %v718, %v715
      %v776 = vpack.c.bf16 %v726, %v723
      %v777 = vpack.c.bf16 %v734, %v731
      %v778 = vpack.c.bf16 %v742, %v739
      %v779 = vpack.c.bf16 %v750, %v747
      %v780 = vpack.c.bf16 %v758, %v755
      %v781 = vpack.c.bf16 %v766, %v763
      %v795 = vunpack.c.l.b16 %v769
      %v796 = vunpack.c.h.b16 %v769
      %v797 = vunpack.c.l.b16 %v770
      %v798 = vunpack.c.h.b16 %v770
      %v799 = vunpack.c.l.b16 %v771
      %v800 = vunpack.c.h.b16 %v771
      %v801 = vunpack.c.l.b16 %v772
      %v802 = vunpack.c.h.b16 %v772
      %v803 = vunpack.c.l.b16 %v773
      %v804 = vunpack.c.h.b16 %v773
      %v805 = vunpack.c.l.b16 %v774
      %v806 = vunpack.c.h.b16 %v774
      %v807 = vunpack.c.l.b16 %v775
      %v808 = vunpack.c.h.b16 %v775
      %v809 = vunpack.c.l.b16 %v776
      %v810 = vunpack.c.h.b16 %v776
      %v811 = vunpack.c.l.b16 %v777
      %v812 = vunpack.c.h.b16 %v777
      %v813 = vunpack.c.l.b16 %v778
      %v814 = vunpack.c.h.b16 %v778
      %v815 = vunpack.c.l.b16 %v779
      %v816 = vunpack.c.h.b16 %v779
      %v817 = vunpack.c.l.b16 %v780
      %v818 = vunpack.c.h.b16 %v780
      %v819 = vunpack.c.l.b16 %v781
      %v820 = vunpack.c.h.b16 %v781
      %v821 = vpack.c.b16 %v795, %v795
      %v822 = vpack.c.b16 %v796, %v796
      %v823 = vpack.c.b16 %v797, %v797
      %v824 = vpack.c.b16 %v798, %v798
      %v825 = vpack.c.b16 %v799, %v799
      %v826 = vpack.c.b16 %v800, %v800
      %v827 = vpack.c.b16 %v801, %v801
      %v828 = vpack.c.b16 %v802, %v802
      %v829 = vpack.c.b16 %v803, %v803
      %v830 = vpack.c.b16 %v804, %v804
      %v831 = vpack.c.b16 %v805, %v805
      %v832 = vpack.c.b16 %v806, %v806
      %v833 = vpack.c.b16 %v807, %v807
      %v834 = vpack.c.b16 %v808, %v808
      %v835 = vpack.c.b16 %v809, %v809
      %v836 = vpack.c.b16 %v810, %v810
      %v837 = vpack.c.b16 %v811, %v811
      %v838 = vpack.c.b16 %v812, %v812
      %v839 = vpack.c.b16 %v813, %v813
      %v840 = vpack.c.b16 %v814, %v814
      %v841 = vpack.c.b16 %v815, %v815
      %v842 = vpack.c.b16 %v816, %v816
      %v843 = vpack.c.b16 %v817, %v817
      %v844 = vpack.c.b16 %v818, %v818
      %v845 = vpack.c.b16 %v819, %v819
      %v846 = vpack.c.b16 %v820, %v820
      %873 = vst [vmem:[%s228] sm:$0xf] %v821
      %874 = vst [vmem:[%s228 + $0x10] sm:$0xf] %v822
      %875 = vst [vmem:[%s228 + $0x20] sm:$0xf] %v823
      %876 = vst [vmem:[%s228 + $0x30] sm:$0xf] %v824
      %877 = vst [vmem:[%s228 + $0x40] sm:$0xf] %v825
      %878 = vst [vmem:[%s228 + $0x50] sm:$0xf] %v826
      %879 = vst [vmem:[%s228 + $0x60] sm:$0xf] %v827
      %880 = vst [vmem:[%s228 + $0x70] sm:$0xf] %v828
      %881 = vst [vmem:[%s228 + $0x80] sm:$0xf] %v829
      %882 = vst [vmem:[%s228 + $0x90] sm:$0xf] %v830
      %883 = vst [vmem:[%s228 + $0xa0] sm:$0xf] %v831
      %884 = vst [vmem:[%s228 + $0xb0] sm:$0xf] %v832
      %885 = vst [vmem:[%s228 + $0xc0] sm:$0xf] %v833
      %886 = vst [vmem:[%s228 + $0xd0] sm:$0xf] %v834
      %887 = vst [vmem:[%s228 + $0xe0] sm:$0xf] %v835
      %888 = vst [vmem:[%s228 + $0xf0] sm:$0xf] %v836
      %889 = vst [vmem:[%s228 + $0x100] sm:$0xf] %v837
      %890 = vst [vmem:[%s228 + $0x110] sm:$0xf] %v838
      %891 = vst [vmem:[%s228 + $0x120] sm:$0xf] %v839
      %892 = vst [vmem:[%s228 + $0x130] sm:$0xf] %v840
      %893 = vst [vmem:[%s228 + $0x140] sm:$0xf] %v841
      %894 = vst [vmem:[%s228 + $0x150] sm:$0xf] %v842
      %895 = vst [vmem:[%s228 + $0x160] sm:$0xf] %v843
      %896 = vst [vmem:[%s228 + $0x170] sm:$0xf] %v844
      %897 = vst [vmem:[%s228 + $0x180] sm:$0xf] %v845
      %898 = vst [vmem:[%s228 + $0x190] sm:$0xf] %v846
      %v899 = vld [vmem:[%s1 + $0x4] sm:$0xf]
      %v900 = vld [vmem:[%s1 + $0x14] sm:$0xf]
      %v901 = vld [vmem:[%s1 + $0x24] sm:$0xf]
      %v902 = vld [vmem:[%s1 + $0x34] sm:$0xf]
      %v903 = vld [vmem:[%s2 + $0x1] sm:$0x1]
      %v905 = vlaneseq
      %v906 = vshrl.u32 %v905, 7
      %v907 = vsub.s32 0, %v906
      %v908 = vrot.slane %v903, %v907
      %v914 = vunpack.c.l.b16 %v899
      %v915 = vunpack.c.l.b16 %v900
      %v916 = vunpack.c.l.b16 %v901
      %v917 = vunpack.c.l.b16 %v902
      %v918 = vpack.c.b16 %v915, %v914
      %v919 = vpack.c.b16 %v917, %v916
      %922 = vmatprep.subr.bf16.mxu0 0
      %923 = vmatpush1.bf16.msra.mxu0 0
      %924 = vmatprep.subr.bf16.mxu0 0
      %925 = vmatpush1.bf16.msra.mxu0 0
      %926 = vmatprep.subr.bf16.mxu0 0
      %927 = vmatpush1.bf16.msra.mxu0 0
      %928 = vmatprep.subr.bf16.mxu0 0
      %929 = vmatpush1.bf16.msra.mxu0 0
      %930 = vmatprep.subr.bf16.mxu0 0
      %931 = vmatpush1.bf16.msra.mxu0 0
      %932 = vmatprep.subr.bf16.mxu0 0
      %933 = vmatpush1.bf16.msra.mxu0 0
      %934 = vmatprep.subr.bf16.mxu0 0
      %935 = vmatpush1.bf16.msra.mxu0 %v919
      %936 = vmatprep.subr.bf16.mxu0 0
      %937 = vmatpush1.bf16.msra.mxu0 %v918
      %938 = vmatprep.subr.bf16.mxu0 0
      %939 = vmatpush2.bf16.msra.mxu0 0
      %940 = vmatprep.subr.bf16.mxu0 0
      %941 = vmatpush2.bf16.msra.mxu0 0
      %942 = vmatprep.subr.bf16.mxu0 0
      %943 = vmatpush2.bf16.msra.mxu0 0
      %944 = vmatprep.subr.bf16.mxu0 0
      %945 = vmatpush2.bf16.msra.mxu0 0
      %946 = vmatprep.subr.bf16.mxu0 0
      %947 = vmatpush2.bf16.msra.mxu0 0
      %948 = vmatprep.subr.bf16.mxu0 0
      %949 = vmatpush2.bf16.msra.mxu0 0
      %950 = vmatprep.subr.bf16.mxu0 0
      %951 = vmatpush2.bf16.msra.mxu0 0
      %952 = vmatprep.subr.bf16.mxu0 0
      %953 = vmatpush2.bf16.msra.mxu0 0
      %954 = vmatprep.mubr.bf16.mxu0 0
      %955 = vmatmul.mubr.bf16.gmra.mxu0 %v364
      %v956 = vpop.f32.mrf.mxu0
      %v957 = vadd.f32 %v908, %v956
      %v958 = vpop.f32.mrf.mxu0
      %v959 = vpop.f32.mrf.mxu0
      %v960 = vadd.f32 %v908, %v959
      %v961 = vpop.f32.mrf.mxu0
      %962 = vmatprep.mubr.bf16.mxu0 0
      %963 = vmatmul.mubr.bf16.gmra.mxu0 %v367
      %v964 = vpop.f32.mrf.mxu0
      %v965 = vadd.f32 %v908, %v964
      %v966 = vpop.f32.mrf.mxu0
      %v967 = vpop.f32.mrf.mxu0
      %v968 = vadd.f32 %v908, %v967
      %v969 = vpop.f32.mrf.mxu0
      %970 = vmatprep.mubr.bf16.mxu0 0
      %971 = vmatmul.mubr.bf16.gmra.mxu0 %v370
      %v972 = vpop.f32.mrf.mxu0
      %v973 = vadd.f32 %v908, %v972
      %v974 = vpop.f32.mrf.mxu0
      %v975 = vpop.f32.mrf.mxu0
      %v976 = vadd.f32 %v908, %v975
      %v977 = vpop.f32.mrf.mxu0
      %978 = vmatprep.mubr.bf16.mxu0 0
      %979 = vmatmul.mubr.bf16.gmra.mxu0 %v373
      %v980 = vpop.f32.mrf.mxu0
      %v981 = vadd.f32 %v908, %v980
      %v982 = vpop.f32.mrf.mxu0
      %v983 = vpop.f32.mrf.mxu0
      %v984 = vadd.f32 %v908, %v983
      %v985 = vpop.f32.mrf.mxu0
      %986 = vmatprep.mubr.bf16.mxu0 0
      %987 = vmatmul.mubr.bf16.gmra.mxu0 %v376
      %v988 = vpop.f32.mrf.mxu0
      %v989 = vadd.f32 %v908, %v988
      %v990 = vpop.f32.mrf.mxu0
      %v991 = vpop.f32.mrf.mxu0
      %v992 = vadd.f32 %v908, %v991
      %v993 = vpop.f32.mrf.mxu0
      %994 = vmatprep.mubr.bf16.mxu0 0
      %995 = vmatmul.mubr.bf16.gmra.mxu0 %v379
      %v996 = vpop.f32.mrf.mxu0
      %v997 = vadd.f32 %v908, %v996
      %v998 = vpop.f32.mrf.mxu0
      %v999 = vpop.f32.mrf.mxu0
      %v1000 = vadd.f32 %v908, %v999
      %v1001 = vpop.f32.mrf.mxu0
      %1002 = vmatprep.mubr.bf16.mxu0 0
      %1003 = vmatmul.mubr.bf16.gmra.mxu0 %v382
      %v1004 = vpop.f32.mrf.mxu0
      %v1005 = vadd.f32 %v908, %v1004
      %v1006 = vpop.f32.mrf.mxu0
      %v1007 = vpop.f32.mrf.mxu0
      %v1008 = vadd.f32 %v908, %v1007
      %v1009 = vpop.f32.mrf.mxu0
      %1010 = vmatprep.mubr.bf16.mxu0 0
      %1011 = vmatmul.mubr.bf16.gmra.mxu0 %v385
      %v1012 = vpop.f32.mrf.mxu0
      %v1013 = vadd.f32 %v908, %v1012
      %v1014 = vpop.f32.mrf.mxu0
      %v1015 = vpop.f32.mrf.mxu0
      %v1016 = vadd.f32 %v908, %v1015
      %v1017 = vpop.f32.mrf.mxu0
      %1018 = vmatprep.mubr.bf16.mxu0 0
      %1019 = vmatmul.mubr.bf16.gmra.mxu0 %v388
      %v1020 = vpop.f32.mrf.mxu0
      %v1021 = vadd.f32 %v908, %v1020
      %v1022 = vpop.f32.mrf.mxu0
      %v1023 = vpop.f32.mrf.mxu0
      %v1024 = vadd.f32 %v908, %v1023
      %v1025 = vpop.f32.mrf.mxu0
      %1026 = vmatprep.mubr.bf16.mxu0 0
      %1027 = vmatmul.mubr.bf16.gmra.mxu0 %v391
      %v1028 = vpop.f32.mrf.mxu0
      %v1029 = vadd.f32 %v908, %v1028
      %v1030 = vpop.f32.mrf.mxu0
      %v1031 = vpop.f32.mrf.mxu0
      %v1032 = vadd.f32 %v908, %v1031
      %v1033 = vpop.f32.mrf.mxu0
      %1034 = vmatprep.mubr.bf16.mxu0 0
      %1035 = vmatmul.mubr.bf16.gmra.mxu0 %v394
      %v1036 = vpop.f32.mrf.mxu0
      %v1037 = vadd.f32 %v908, %v1036
      %v1038 = vpop.f32.mrf.mxu0
      %v1039 = vpop.f32.mrf.mxu0
      %v1040 = vadd.f32 %v908, %v1039
      %v1041 = vpop.f32.mrf.mxu0
      %1042 = vmatprep.mubr.bf16.mxu0 0
      %1043 = vmatmul.mubr.bf16.gmra.mxu0 %v397
      %v1044 = vpop.f32.mrf.mxu0
      %v1045 = vadd.f32 %v908, %v1044
      %v1046 = vpop.f32.mrf.mxu0
      %v1047 = vpop.f32.mrf.mxu0
      %v1048 = vadd.f32 %v908, %v1047
      %v1049 = vpop.f32.mrf.mxu0
      %1050 = vmatprep.mubr.bf16.mxu0 0
      %1051 = vmatmul.mubr.bf16.gmra.mxu0 %v400
      %v1052 = vpop.f32.mrf.mxu0
      %v1053 = vadd.f32 %v908, %v1052
      %v1054 = vpop.f32.mrf.mxu0
      %v1055 = vpop.f32.mrf.mxu0
      %v1056 = vadd.f32 %v908, %v1055
      %v1057 = vpop.f32.mrf.mxu0
      %1058 = vdwg.mxu0
      %v1059 = vmax.f32 %v957, 0.0
      %v1060 = vmax.f32 %v960, 0.0
      %v1061 = vmax.f32 %v965, 0.0
      %v1062 = vmax.f32 %v968, 0.0
      %v1063 = vmax.f32 %v973, 0.0
      %v1064 = vmax.f32 %v976, 0.0
      %v1065 = vmax.f32 %v981, 0.0
      %v1066 = vmax.f32 %v984, 0.0
      %v1067 = vmax.f32 %v989, 0.0
      %v1068 = vmax.f32 %v992, 0.0
      %v1069 = vmax.f32 %v997, 0.0
      %v1070 = vmax.f32 %v1000, 0.0
      %v1071 = vmax.f32 %v1005, 0.0
      %v1072 = vmax.f32 %v1008, 0.0
      %v1073 = vmax.f32 %v1013, 0.0
      %v1074 = vmax.f32 %v1016, 0.0
      %v1075 = vmax.f32 %v1021, 0.0
      %v1076 = vmax.f32 %v1024, 0.0
      %v1077 = vmax.f32 %v1029, 0.0
      %v1078 = vmax.f32 %v1032, 0.0
      %v1079 = vmax.f32 %v1037, 0.0
      %v1080 = vmax.f32 %v1040, 0.0
      %v1081 = vmax.f32 %v1045, 0.0
      %v1082 = vmax.f32 %v1048, 0.0
      %v1083 = vmax.f32 %v1053, 0.0
      %v1084 = vmax.f32 %v1056, 0.0
      %v1085 = vpack.c.bf16 %v1060, %v1059
      %v1086 = vpack.c.bf16 %v1062, %v1061
      %v1087 = vpack.c.bf16 %v1064, %v1063
      %v1088 = vpack.c.bf16 %v1066, %v1065
      %v1089 = vpack.c.bf16 %v1068, %v1067
      %v1090 = vpack.c.bf16 %v1070, %v1069
      %v1091 = vpack.c.bf16 %v1072, %v1071
      %v1092 = vpack.c.bf16 %v1074, %v1073
      %v1093 = vpack.c.bf16 %v1076, %v1075
      %v1094 = vpack.c.bf16 %v1078, %v1077
      %v1095 = vpack.c.bf16 %v1080, %v1079
      %v1096 = vpack.c.bf16 %v1082, %v1081
      %v1097 = vpack.c.bf16 %v1084, %v1083
      %1098 = vmatprep.subr.bf16.mxu0 0
      %1099 = vmatpush1.bf16.msra.mxu0 %v623
      %1100 = vmatprep.subr.bf16.mxu0 0
      %1101 = vmatpush1.bf16.msra.mxu0 %v622
      %1102 = vmatprep.subr.bf16.mxu0 0
      %1103 = vmatpush1.bf16.msra.mxu0 %v621
      %1104 = vmatprep.subr.bf16.mxu0 0
      %1105 = vmatpush1.bf16.msra.mxu0 %v620
      %1106 = vmatprep.subr.bf16.mxu0 0
      %1107 = vmatpush1.bf16.msra.mxu0 %v619
      %1108 = vmatprep.subr.bf16.mxu0 0
      %1109 = vmatpush1.bf16.msra.mxu0 %v618
      %1110 = vmatprep.subr.bf16.mxu0 0
      %1111 = vmatpush1.bf16.msra.mxu0 %v617
      %1112 = vmatprep.subr.bf16.mxu0 0
      %1113 = vmatpush1.bf16.msra.mxu0 %v616
      %1114 = vmatprep.subr.bf16.mxu0 0
      %1115 = vmatpush2.bf16.msra.mxu0 0
      %1116 = vmatprep.subr.bf16.mxu0 0
      %1117 = vmatpush2.bf16.msra.mxu0 0
      %1118 = vmatprep.subr.bf16.mxu0 0
      %1119 = vmatpush2.bf16.msra.mxu0 0
      %1120 = vmatprep.subr.bf16.mxu0 0
      %1121 = vmatpush2.bf16.msra.mxu0 0
      %1122 = vmatprep.subr.bf16.mxu0 0
      %1123 = vmatpush2.bf16.msra.mxu0 0
      %1124 = vmatprep.subr.bf16.mxu0 0
      %1125 = vmatpush2.bf16.msra.mxu0 0
      %1126 = vmatprep.subr.bf16.mxu0 0
      %1127 = vmatpush2.bf16.msra.mxu0 0
      %1128 = vmatprep.subr.bf16.mxu0 0
      %1129 = vmatpush2.bf16.msra.mxu0 0
      %1130 = vmatprep.mubr.bf16.mxu0 0
      %1131 = vmatmul.mubr.bf16.gmra.mxu0 %v1085
      %v1132 = vpop.f32.mrf.mxu0
      %v1133 = vadd.f32 %v582, %v1132
      %v1134 = vpop.f32.mrf.mxu0
      %v1135 = vpop.f32.mrf.mxu0
      %v1136 = vadd.f32 %v582, %v1135
      %v1137 = vpop.f32.mrf.mxu0
      %1138 = vmatprep.mubr.bf16.mxu0 0
      %1139 = vmatmul.mubr.bf16.gmra.mxu0 %v1086
      %v1140 = vpop.f32.mrf.mxu0
      %v1141 = vadd.f32 %v582, %v1140
      %v1142 = vpop.f32.mrf.mxu0
      %v1143 = vpop.f32.mrf.mxu0
      %v1144 = vadd.f32 %v582, %v1143
      %v1145 = vpop.f32.mrf.mxu0
      %1146 = vmatprep.mubr.bf16.mxu0 0
      %1147 = vmatmul.mubr.bf16.gmra.mxu0 %v1087
      %v1148 = vpop.f32.mrf.mxu0
      %v1149 = vadd.f32 %v582, %v1148
      %v1150 = vpop.f32.mrf.mxu0
      %v1151 = vpop.f32.mrf.mxu0
      %v1152 = vadd.f32 %v582, %v1151
      %v1153 = vpop.f32.mrf.mxu0
      %1154 = vmatprep.mubr.bf16.mxu0 0
      %1155 = vmatmul.mubr.bf16.gmra.mxu0 %v1088
      %v1156 = vpop.f32.mrf.mxu0
      %v1157 = vadd.f32 %v582, %v1156
      %v1158 = vpop.f32.mrf.mxu0
      %v1159 = vpop.f32.mrf.mxu0
      %v1160 = vadd.f32 %v582, %v1159
      %v1161 = vpop.f32.mrf.mxu0
      %1162 = vmatprep.mubr.bf16.mxu0 0
      %1163 = vmatmul.mubr.bf16.gmra.mxu0 %v1089
      %v1164 = vpop.f32.mrf.mxu0
      %v1165 = vadd.f32 %v582, %v1164
      %v1166 = vpop.f32.mrf.mxu0
      %v1167 = vpop.f32.mrf.mxu0
      %v1168 = vadd.f32 %v582, %v1167
      %v1169 = vpop.f32.mrf.mxu0
      %1170 = vmatprep.mubr.bf16.mxu0 0
      %1171 = vmatmul.mubr.bf16.gmra.mxu0 %v1090
      %v1172 = vpop.f32.mrf.mxu0
      %v1173 = vadd.f32 %v582, %v1172
      %v1174 = vpop.f32.mrf.mxu0
      %v1175 = vpop.f32.mrf.mxu0
      %v1176 = vadd.f32 %v582, %v1175
      %v1177 = vpop.f32.mrf.mxu0
      %1178 = vmatprep.mubr.bf16.mxu0 0
      %1179 = vmatmul.mubr.bf16.gmra.mxu0 %v1091
      %v1180 = vpop.f32.mrf.mxu0
      %v1181 = vadd.f32 %v582, %v1180
      %v1182 = vpop.f32.mrf.mxu0
      %v1183 = vpop.f32.mrf.mxu0
      %v1184 = vadd.f32 %v582, %v1183
      %v1185 = vpop.f32.mrf.mxu0
      %1186 = vmatprep.mubr.bf16.mxu0 0
      %1187 = vmatmul.mubr.bf16.gmra.mxu0 %v1092
      %v1188 = vpop.f32.mrf.mxu0
      %v1189 = vadd.f32 %v582, %v1188
      %v1190 = vpop.f32.mrf.mxu0
      %v1191 = vpop.f32.mrf.mxu0
      %v1192 = vadd.f32 %v582, %v1191
      %v1193 = vpop.f32.mrf.mxu0
      %1194 = vmatprep.mubr.bf16.mxu0 0
      %1195 = vmatmul.mubr.bf16.gmra.mxu0 %v1093
      %v1196 = vpop.f32.mrf.mxu0
      %v1197 = vadd.f32 %v582, %v1196
      %v1198 = vpop.f32.mrf.mxu0
      %v1199 = vpop.f32.mrf.mxu0
      %v1200 = vadd.f32 %v582, %v1199
      %v1201 = vpop.f32.mrf.mxu0
      %1202 = vmatprep.mubr.bf16.mxu0 0
      %1203 = vmatmul.mubr.bf16.gmra.mxu0 %v1094
      %v1204 = vpop.f32.mrf.mxu0
      %v1205 = vadd.f32 %v582, %v1204
      %v1206 = vpop.f32.mrf.mxu0
      %v1207 = vpop.f32.mrf.mxu0
      %v1208 = vadd.f32 %v582, %v1207
      %v1209 = vpop.f32.mrf.mxu0
      %1210 = vmatprep.mubr.bf16.mxu0 0
      %1211 = vmatmul.mubr.bf16.gmra.mxu0 %v1095
      %v1212 = vpop.f32.mrf.mxu0
      %v1213 = vadd.f32 %v582, %v1212
      %v1214 = vpop.f32.mrf.mxu0
      %v1215 = vpop.f32.mrf.mxu0
      %v1216 = vadd.f32 %v582, %v1215
      %v1217 = vpop.f32.mrf.mxu0
      %1218 = vmatprep.mubr.bf16.mxu0 0
      %1219 = vmatmul.mubr.bf16.gmra.mxu0 %v1096
      %v1220 = vpop.f32.mrf.mxu0
      %v1221 = vadd.f32 %v582, %v1220
      %v1222 = vpop.f32.mrf.mxu0
      %v1223 = vpop.f32.mrf.mxu0
      %v1224 = vadd.f32 %v582, %v1223
      %v1225 = vpop.f32.mrf.mxu0
      %1226 = vmatprep.mubr.bf16.mxu0 0
      %1227 = vmatmul.mubr.bf16.gmra.mxu0 %v1097
      %v1228 = vpop.f32.mrf.mxu0
      %v1229 = vadd.f32 %v582, %v1228
      %v1230 = vpop.f32.mrf.mxu0
      %v1231 = vpop.f32.mrf.mxu0
      %v1232 = vadd.f32 %v582, %v1231
      %v1233 = vpop.f32.mrf.mxu0
      %1234 = vdwg.mxu0
      %v1235 = vpack.c.bf16 %v1136, %v1133
      %v1236 = vpack.c.bf16 %v1144, %v1141
      %v1237 = vpack.c.bf16 %v1152, %v1149
      %v1238 = vpack.c.bf16 %v1160, %v1157
      %v1239 = vpack.c.bf16 %v1168, %v1165
      %v1240 = vpack.c.bf16 %v1176, %v1173
      %v1241 = vpack.c.bf16 %v1184, %v1181
      %v1242 = vpack.c.bf16 %v1192, %v1189
      %v1243 = vpack.c.bf16 %v1200, %v1197
      %v1244 = vpack.c.bf16 %v1208, %v1205
      %v1245 = vpack.c.bf16 %v1216, %v1213
      %v1246 = vpack.c.bf16 %v1224, %v1221
      %v1247 = vpack.c.bf16 %v1232, %v1229
      %v1261 = vunpack.c.l.b16 %v1235
      %v1262 = vunpack.c.h.b16 %v1235
      %v1263 = vunpack.c.l.b16 %v1236
      %v1264 = vunpack.c.h.b16 %v1236
      %v1265 = vunpack.c.l.b16 %v1237
      %v1266 = vunpack.c.h.b16 %v1237
      %v1267 = vunpack.c.l.b16 %v1238
      %v1268 = vunpack.c.h.b16 %v1238
      %v1269 = vunpack.c.l.b16 %v1239
      %v1270 = vunpack.c.h.b16 %v1239
      %v1271 = vunpack.c.l.b16 %v1240
      %v1272 = vunpack.c.h.b16 %v1240
      %v1273 = vunpack.c.l.b16 %v1241
      %v1274 = vunpack.c.h.b16 %v1241
      %v1275 = vunpack.c.l.b16 %v1242
      %v1276 = vunpack.c.h.b16 %v1242
      %v1277 = vunpack.c.l.b16 %v1243
      %v1278 = vunpack.c.h.b16 %v1243
      %v1279 = vunpack.c.l.b16 %v1244
      %v1280 = vunpack.c.h.b16 %v1244
      %v1281 = vunpack.c.l.b16 %v1245
      %v1282 = vunpack.c.h.b16 %v1245
      %v1283 = vunpack.c.l.b16 %v1246
      %v1284 = vunpack.c.h.b16 %v1246
      %v1285 = vunpack.c.l.b16 %v1247
      %v1286 = vunpack.c.h.b16 %v1247
      %v1287 = vpack.c.b16 %v1261, %v1261
      %v1288 = vpack.c.b16 %v1262, %v1262
      %v1289 = vpack.c.b16 %v1263, %v1263
      %v1290 = vpack.c.b16 %v1264, %v1264
      %v1291 = vpack.c.b16 %v1265, %v1265
      %v1292 = vpack.c.b16 %v1266, %v1266
      %v1293 = vpack.c.b16 %v1267, %v1267
      %v1294 = vpack.c.b16 %v1268, %v1268
      %v1295 = vpack.c.b16 %v1269, %v1269
      %v1296 = vpack.c.b16 %v1270, %v1270
      %v1297 = vpack.c.b16 %v1271, %v1271
      %v1298 = vpack.c.b16 %v1272, %v1272
      %v1299 = vpack.c.b16 %v1273, %v1273
      %v1300 = vpack.c.b16 %v1274, %v1274
      %v1301 = vpack.c.b16 %v1275, %v1275
      %v1302 = vpack.c.b16 %v1276, %v1276
      %v1303 = vpack.c.b16 %v1277, %v1277
      %v1304 = vpack.c.b16 %v1278, %v1278
      %v1305 = vpack.c.b16 %v1279, %v1279
      %v1306 = vpack.c.b16 %v1280, %v1280
      %v1307 = vpack.c.b16 %v1281, %v1281
      %v1308 = vpack.c.b16 %v1282, %v1282
      %v1309 = vpack.c.b16 %v1283, %v1283
      %v1310 = vpack.c.b16 %v1284, %v1284
      %v1311 = vpack.c.b16 %v1285, %v1285
      %v1312 = vpack.c.b16 %v1286, %v1286
      %1339 = vst [vmem:[%s228 + $0x4] sm:$0xf] %v1287
      %1340 = vst [vmem:[%s228 + $0x14] sm:$0xf] %v1288
      %1341 = vst [vmem:[%s228 + $0x24] sm:$0xf] %v1289
      %1342 = vst [vmem:[%s228 + $0x34] sm:$0xf] %v1290
      %1343 = vst [vmem:[%s228 + $0x44] sm:$0xf] %v1291
      %1344 = vst [vmem:[%s228 + $0x54] sm:$0xf] %v1292
      %1345 = vst [vmem:[%s228 + $0x64] sm:$0xf] %v1293
      %1346 = vst [vmem:[%s228 + $0x74] sm:$0xf] %v1294
      %1347 = vst [vmem:[%s228 + $0x84] sm:$0xf] %v1295
      %1348 = vst [vmem:[%s228 + $0x94] sm:$0xf] %v1296
      %1349 = vst [vmem:[%s228 + $0xa4] sm:$0xf] %v1297
      %1350 = vst [vmem:[%s228 + $0xb4] sm:$0xf] %v1298
      %1351 = vst [vmem:[%s228 + $0xc4] sm:$0xf] %v1299
      %1352 = vst [vmem:[%s228 + $0xd4] sm:$0xf] %v1300
      %1353 = vst [vmem:[%s228 + $0xe4] sm:$0xf] %v1301
      %1354 = vst [vmem:[%s228 + $0xf4] sm:$0xf] %v1302
      %1355 = vst [vmem:[%s228 + $0x104] sm:$0xf] %v1303
      %1356 = vst [vmem:[%s228 + $0x114] sm:$0xf] %v1304
      %1357 = vst [vmem:[%s228 + $0x124] sm:$0xf] %v1305
      %1358 = vst [vmem:[%s228 + $0x134] sm:$0xf] %v1306
      %1359 = vst [vmem:[%s228 + $0x144] sm:$0xf] %v1307
      %1360 = vst [vmem:[%s228 + $0x154] sm:$0xf] %v1308
      %1361 = vst [vmem:[%s228 + $0x164] sm:$0xf] %v1309
      %1362 = vst [vmem:[%s228 + $0x174] sm:$0xf] %v1310
      %1363 = vst [vmem:[%s228 + $0x184] sm:$0xf] %v1311
      %1364 = vst [vmem:[%s228 + $0x194] sm:$0xf] %v1312
      %v1365 = vld [vmem:[%s1 + $0x8] sm:$0xf]
      %v1366 = vld [vmem:[%s1 + $0x18] sm:$0xf]
      %v1367 = vld [vmem:[%s1 + $0x28] sm:$0xf]
      %v1368 = vld [vmem:[%s1 + $0x38] sm:$0xf]
      %v1369 = vld [vmem:[%s2 + $0x2] sm:$0x1]
      %v1371 = vlaneseq
      %v1372 = vshrl.u32 %v1371, 7
      %v1373 = vsub.s32 0, %v1372
      %v1374 = vrot.slane %v1369, %v1373
      %v1380 = vunpack.c.l.b16 %v1365
      %v1381 = vunpack.c.l.b16 %v1366
      %v1382 = vunpack.c.l.b16 %v1367
      %v1383 = vunpack.c.l.b16 %v1368
      %v1384 = vpack.c.b16 %v1381, %v1380
      %v1385 = vpack.c.b16 %v1383, %v1382
      %1388 = vmatprep.subr.bf16.mxu0 0
      %1389 = vmatpush1.bf16.msra.mxu0 0
      %1390 = vmatprep.subr.bf16.mxu0 0
      %1391 = vmatpush1.bf16.msra.mxu0 0
      %1392 = vmatprep.subr.bf16.mxu0 0
      %1393 = vmatpush1.bf16.msra.mxu0 0
      %1394 = vmatprep.subr.bf16.mxu0 0
      %1395 = vmatpush1.bf16.msra.mxu0 0
      %1396 = vmatprep.subr.bf16.mxu0 0
      %1397 = vmatpush1.bf16.msra.mxu0 0
      %1398 = vmatprep.subr.bf16.mxu0 0
      %1399 = vmatpush1.bf16.msra.mxu0 0
      %1400 = vmatprep.subr.bf16.mxu0 0
      %1401 = vmatpush1.bf16.msra.mxu0 %v1385
      %1402 = vmatprep.subr.bf16.mxu0 0
      %1403 = vmatpush1.bf16.msra.mxu0 %v1384
      %1404 = vmatprep.subr.bf16.mxu0 0
      %1405 = vmatpush2.bf16.msra.mxu0 0
      %1406 = vmatprep.subr.bf16.mxu0 0
      %1407 = vmatpush2.bf16.msra.mxu0 0
      %1408 = vmatprep.subr.bf16.mxu0 0
      %1409 = vmatpush2.bf16.msra.mxu0 0
      %1410 = vmatprep.subr.bf16.mxu0 0
      %1411 = vmatpush2.bf16.msra.mxu0 0
      %1412 = vmatprep.subr.bf16.mxu0 0
      %1413 = vmatpush2.bf16.msra.mxu0 0
      %1414 = vmatprep.subr.bf16.mxu0 0
      %1415 = vmatpush2.bf16.msra.mxu0 0
      %1416 = vmatprep.subr.bf16.mxu0 0
      %1417 = vmatpush2.bf16.msra.mxu0 0
      %1418 = vmatprep.subr.bf16.mxu0 0
      %1419 = vmatpush2.bf16.msra.mxu0 0
      %1420 = vmatprep.mubr.bf16.mxu0 0
      %1421 = vmatmul.mubr.bf16.gmra.mxu0 %v364
      %v1422 = vpop.f32.mrf.mxu0
      %v1423 = vadd.f32 %v1374, %v1422
      %v1424 = vpop.f32.mrf.mxu0
      %v1425 = vpop.f32.mrf.mxu0
      %v1426 = vadd.f32 %v1374, %v1425
      %v1427 = vpop.f32.mrf.mxu0
      %1428 = vmatprep.mubr.bf16.mxu0 0
      %1429 = vmatmul.mubr.bf16.gmra.mxu0 %v367
      %v1430 = vpop.f32.mrf.mxu0
      %v1431 = vadd.f32 %v1374, %v1430
      %v1432 = vpop.f32.mrf.mxu0
      %v1433 = vpop.f32.mrf.mxu0
      %v1434 = vadd.f32 %v1374, %v1433
      %v1435 = vpop.f32.mrf.mxu0
      %1436 = vmatprep.mubr.bf16.mxu0 0
      %1437 = vmatmul.mubr.bf16.gmra.mxu0 %v370
      %v1438 = vpop.f32.mrf.mxu0
      %v1439 = vadd.f32 %v1374, %v1438
      %v1440 = vpop.f32.mrf.mxu0
      %v1441 = vpop.f32.mrf.mxu0
      %v1442 = vadd.f32 %v1374, %v1441
      %v1443 = vpop.f32.mrf.mxu0
      %1444 = vmatprep.mubr.bf16.mxu0 0
      %1445 = vmatmul.mubr.bf16.gmra.mxu0 %v373
      %v1446 = vpop.f32.mrf.mxu0
      %v1447 = vadd.f32 %v1374, %v1446
      %v1448 = vpop.f32.mrf.mxu0
      %v1449 = vpop.f32.mrf.mxu0
      %v1450 = vadd.f32 %v1374, %v1449
      %v1451 = vpop.f32.mrf.mxu0
      %1452 = vmatprep.mubr.bf16.mxu0 0
      %1453 = vmatmul.mubr.bf16.gmra.mxu0 %v376
      %v1454 = vpop.f32.mrf.mxu0
      %v1455 = vadd.f32 %v1374, %v1454
      %v1456 = vpop.f32.mrf.mxu0
      %v1457 = vpop.f32.mrf.mxu0
      %v1458 = vadd.f32 %v1374, %v1457
      %v1459 = vpop.f32.mrf.mxu0
      %1460 = vmatprep.mubr.bf16.mxu0 0
      %1461 = vmatmul.mubr.bf16.gmra.mxu0 %v379
      %v1462 = vpop.f32.mrf.mxu0
      %v1463 = vadd.f32 %v1374, %v1462
      %v1464 = vpop.f32.mrf.mxu0
      %v1465 = vpop.f32.mrf.mxu0
      %v1466 = vadd.f32 %v1374, %v1465
      %v1467 = vpop.f32.mrf.mxu0
      %1468 = vmatprep.mubr.bf16.mxu0 0
      %1469 = vmatmul.mubr.bf16.gmra.mxu0 %v382
      %v1470 = vpop.f32.mrf.mxu0
      %v1471 = vadd.f32 %v1374, %v1470
      %v1472 = vpop.f32.mrf.mxu0
      %v1473 = vpop.f32.mrf.mxu0
      %v1474 = vadd.f32 %v1374, %v1473
      %v1475 = vpop.f32.mrf.mxu0
      %1476 = vmatprep.mubr.bf16.mxu0 0
      %1477 = vmatmul.mubr.bf16.gmra.mxu0 %v385
      %v1478 = vpop.f32.mrf.mxu0
      %v1479 = vadd.f32 %v1374, %v1478
      %v1480 = vpop.f32.mrf.mxu0
      %v1481 = vpop.f32.mrf.mxu0
      %v1482 = vadd.f32 %v1374, %v1481
      %v1483 = vpop.f32.mrf.mxu0
      %1484 = vmatprep.mubr.bf16.mxu0 0
      %1485 = vmatmul.mubr.bf16.gmra.mxu0 %v388
      %v1486 = vpop.f32.mrf.mxu0
      %v1487 = vadd.f32 %v1374, %v1486
      %v1488 = vpop.f32.mrf.mxu0
      %v1489 = vpop.f32.mrf.mxu0
      %v1490 = vadd.f32 %v1374, %v1489
      %v1491 = vpop.f32.mrf.mxu0
      %1492 = vmatprep.mubr.bf16.mxu0 0
      %1493 = vmatmul.mubr.bf16.gmra.mxu0 %v391
      %v1494 = vpop.f32.mrf.mxu0
      %v1495 = vadd.f32 %v1374, %v1494
      %v1496 = vpop.f32.mrf.mxu0
      %v1497 = vpop.f32.mrf.mxu0
      %v1498 = vadd.f32 %v1374, %v1497
      %v1499 = vpop.f32.mrf.mxu0
      %1500 = vmatprep.mubr.bf16.mxu0 0
      %1501 = vmatmul.mubr.bf16.gmra.mxu0 %v394
      %v1502 = vpop.f32.mrf.mxu0
      %v1503 = vadd.f32 %v1374, %v1502
      %v1504 = vpop.f32.mrf.mxu0
      %v1505 = vpop.f32.mrf.mxu0
      %v1506 = vadd.f32 %v1374, %v1505
      %v1507 = vpop.f32.mrf.mxu0
      %1508 = vmatprep.mubr.bf16.mxu0 0
      %1509 = vmatmul.mubr.bf16.gmra.mxu0 %v397
      %v1510 = vpop.f32.mrf.mxu0
      %v1511 = vadd.f32 %v1374, %v1510
      %v1512 = vpop.f32.mrf.mxu0
      %v1513 = vpop.f32.mrf.mxu0
      %v1514 = vadd.f32 %v1374, %v1513
      %v1515 = vpop.f32.mrf.mxu0
      %1516 = vmatprep.mubr.bf16.mxu0 0
      %1517 = vmatmul.mubr.bf16.gmra.mxu0 %v400
      %v1518 = vpop.f32.mrf.mxu0
      %v1519 = vadd.f32 %v1374, %v1518
      %v1520 = vpop.f32.mrf.mxu0
      %v1521 = vpop.f32.mrf.mxu0
      %v1522 = vadd.f32 %v1374, %v1521
      %v1523 = vpop.f32.mrf.mxu0
      %1524 = vdwg.mxu0
      %v1525 = vmax.f32 %v1423, 0.0
      %v1526 = vmax.f32 %v1426, 0.0
      %v1527 = vmax.f32 %v1431, 0.0
      %v1528 = vmax.f32 %v1434, 0.0
      %v1529 = vmax.f32 %v1439, 0.0
      %v1530 = vmax.f32 %v1442, 0.0
      %v1531 = vmax.f32 %v1447, 0.0
      %v1532 = vmax.f32 %v1450, 0.0
      %v1533 = vmax.f32 %v1455, 0.0
      %v1534 = vmax.f32 %v1458, 0.0
      %v1535 = vmax.f32 %v1463, 0.0
      %v1536 = vmax.f32 %v1466, 0.0
      %v1537 = vmax.f32 %v1471, 0.0
      %v1538 = vmax.f32 %v1474, 0.0
      %v1539 = vmax.f32 %v1479, 0.0
      %v1540 = vmax.f32 %v1482, 0.0
      %v1541 = vmax.f32 %v1487, 0.0
      %v1542 = vmax.f32 %v1490, 0.0
      %v1543 = vmax.f32 %v1495, 0.0
      %v1544 = vmax.f32 %v1498, 0.0
      %v1545 = vmax.f32 %v1503, 0.0
      %v1546 = vmax.f32 %v1506, 0.0
      %v1547 = vmax.f32 %v1511, 0.0
      %v1548 = vmax.f32 %v1514, 0.0
      %v1549 = vmax.f32 %v1519, 0.0
      %v1550 = vmax.f32 %v1522, 0.0
      %v1551 = vpack.c.bf16 %v1526, %v1525
      %v1552 = vpack.c.bf16 %v1528, %v1527
      %v1553 = vpack.c.bf16 %v1530, %v1529
      %v1554 = vpack.c.bf16 %v1532, %v1531
      %v1555 = vpack.c.bf16 %v1534, %v1533
      %v1556 = vpack.c.bf16 %v1536, %v1535
      %v1557 = vpack.c.bf16 %v1538, %v1537
      %v1558 = vpack.c.bf16 %v1540, %v1539
      %v1559 = vpack.c.bf16 %v1542, %v1541
      %v1560 = vpack.c.bf16 %v1544, %v1543
      %v1561 = vpack.c.bf16 %v1546, %v1545
      %v1562 = vpack.c.bf16 %v1548, %v1547
      %v1563 = vpack.c.bf16 %v1550, %v1549
      %1564 = vmatprep.subr.bf16.mxu0 0
      %1565 = vmatpush1.bf16.msra.mxu0 %v623
      %1566 = vmatprep.subr.bf16.mxu0 0
      %1567 = vmatpush1.bf16.msra.mxu0 %v622
      %1568 = vmatprep.subr.bf16.mxu0 0
      %1569 = vmatpush1.bf16.msra.mxu0 %v621
      %1570 = vmatprep.subr.bf16.mxu0 0
      %1571 = vmatpush1.bf16.msra.mxu0 %v620
      %1572 = vmatprep.subr.bf16.mxu0 0
      %1573 = vmatpush1.bf16.msra.mxu0 %v619
      %1574 = vmatprep.subr.bf16.mxu0 0
      %1575 = vmatpush1.bf16.msra.mxu0 %v618
      %1576 = vmatprep.subr.bf16.mxu0 0
      %1577 = vmatpush1.bf16.msra.mxu0 %v617
      %1578 = vmatprep.subr.bf16.mxu0 0
      %1579 = vmatpush1.bf16.msra.mxu0 %v616
      %1580 = vmatprep.subr.bf16.mxu0 0
      %1581 = vmatpush2.bf16.msra.mxu0 0
      %1582 = vmatprep.subr.bf16.mxu0 0
      %1583 = vmatpush2.bf16.msra.mxu0 0
      %1584 = vmatprep.subr.bf16.mxu0 0
      %1585 = vmatpush2.bf16.msra.mxu0 0
      %1586 = vmatprep.subr.bf16.mxu0 0
      %1587 = vmatpush2.bf16.msra.mxu0 0
      %1588 = vmatprep.subr.bf16.mxu0 0
      %1589 = vmatpush2.bf16.msra.mxu0 0
      %1590 = vmatprep.subr.bf16.mxu0 0
      %1591 = vmatpush2.bf16.msra.mxu0 0
      %1592 = vmatprep.subr.bf16.mxu0 0
      %1593 = vmatpush2.bf16.msra.mxu0 0
      %1594 = vmatprep.subr.bf16.mxu0 0
      %1595 = vmatpush2.bf16.msra.mxu0 0
      %1596 = vmatprep.mubr.bf16.mxu0 0
      %1597 = vmatmul.mubr.bf16.gmra.mxu0 %v1551
      %v1598 = vpop.f32.mrf.mxu0
      %v1599 = vadd.f32 %v582, %v1598
      %v1600 = vpop.f32.mrf.mxu0
      %v1601 = vpop.f32.mrf.mxu0
      %v1602 = vadd.f32 %v582, %v1601
      %v1603 = vpop.f32.mrf.mxu0
      %1604 = vmatprep.mubr.bf16.mxu0 0
      %1605 = vmatmul.mubr.bf16.gmra.mxu0 %v1552
      %v1606 = vpop.f32.mrf.mxu0
      %v1607 = vadd.f32 %v582, %v1606
      %v1608 = vpop.f32.mrf.mxu0
      %v1609 = vpop.f32.mrf.mxu0
      %v1610 = vadd.f32 %v582, %v1609
      %v1611 = vpop.f32.mrf.mxu0
      %1612 = vmatprep.mubr.bf16.mxu0 0
      %1613 = vmatmul.mubr.bf16.gmra.mxu0 %v1553
      %v1614 = vpop.f32.mrf.mxu0
      %v1615 = vadd.f32 %v582, %v1614
      %v1616 = vpop.f32.mrf.mxu0
      %v1617 = vpop.f32.mrf.mxu0
      %v1618 = vadd.f32 %v582, %v1617
      %v1619 = vpop.f32.mrf.mxu0
      %1620 = vmatprep.mubr.bf16.mxu0 0
      %1621 = vmatmul.mubr.bf16.gmra.mxu0 %v1554
      %v1622 = vpop.f32.mrf.mxu0
      %v1623 = vadd.f32 %v582, %v1622
      %v1624 = vpop.f32.mrf.mxu0
      %v1625 = vpop.f32.mrf.mxu0
      %v1626 = vadd.f32 %v582, %v1625
      %v1627 = vpop.f32.mrf.mxu0
      %1628 = vmatprep.mubr.bf16.mxu0 0
      %1629 = vmatmul.mubr.bf16.gmra.mxu0 %v1555
      %v1630 = vpop.f32.mrf.mxu0
      %v1631 = vadd.f32 %v582, %v1630
      %v1632 = vpop.f32.mrf.mxu0
      %v1633 = vpop.f32.mrf.mxu0
      %v1634 = vadd.f32 %v582, %v1633
      %v1635 = vpop.f32.mrf.mxu0
      %1636 = vmatprep.mubr.bf16.mxu0 0
      %1637 = vmatmul.mubr.bf16.gmra.mxu0 %v1556
      %v1638 = vpop.f32.mrf.mxu0
      %v1639 = vadd.f32 %v582, %v1638
      %v1640 = vpop.f32.mrf.mxu0
      %v1641 = vpop.f32.mrf.mxu0
      %v1642 = vadd.f32 %v582, %v1641
      %v1643 = vpop.f32.mrf.mxu0
      %1644 = vmatprep.mubr.bf16.mxu0 0
      %1645 = vmatmul.mubr.bf16.gmra.mxu0 %v1557
      %v1646 = vpop.f32.mrf.mxu0
      %v1647 = vadd.f32 %v582, %v1646
      %v1648 = vpop.f32.mrf.mxu0
      %v1649 = vpop.f32.mrf.mxu0
      %v1650 = vadd.f32 %v582, %v1649
      %v1651 = vpop.f32.mrf.mxu0
      %1652 = vmatprep.mubr.bf16.mxu0 0
      %1653 = vmatmul.mubr.bf16.gmra.mxu0 %v1558
      %v1654 = vpop.f32.mrf.mxu0
      %v1655 = vadd.f32 %v582, %v1654
      %v1656 = vpop.f32.mrf.mxu0
      %v1657 = vpop.f32.mrf.mxu0
      %v1658 = vadd.f32 %v582, %v1657
      %v1659 = vpop.f32.mrf.mxu0
      %1660 = vmatprep.mubr.bf16.mxu0 0
      %1661 = vmatmul.mubr.bf16.gmra.mxu0 %v1559
      %v1662 = vpop.f32.mrf.mxu0
      %v1663 = vadd.f32 %v582, %v1662
      %v1664 = vpop.f32.mrf.mxu0
      %v1665 = vpop.f32.mrf.mxu0
      %v1666 = vadd.f32 %v582, %v1665
      %v1667 = vpop.f32.mrf.mxu0
      %1668 = vmatprep.mubr.bf16.mxu0 0
      %1669 = vmatmul.mubr.bf16.gmra.mxu0 %v1560
      %v1670 = vpop.f32.mrf.mxu0
      %v1671 = vadd.f32 %v582, %v1670
      %v1672 = vpop.f32.mrf.mxu0
      %v1673 = vpop.f32.mrf.mxu0
      %v1674 = vadd.f32 %v582, %v1673
      %v1675 = vpop.f32.mrf.mxu0
      %1676 = vmatprep.mubr.bf16.mxu0 0
      %1677 = vmatmul.mubr.bf16.gmra.mxu0 %v1561
      %v1678 = vpop.f32.mrf.mxu0
      %v1679 = vadd.f32 %v582, %v1678
      %v1680 = vpop.f32.mrf.mxu0
      %v1681 = vpop.f32.mrf.mxu0
      %v1682 = vadd.f32 %v582, %v1681
      %v1683 = vpop.f32.mrf.mxu0
      %1684 = vmatprep.mubr.bf16.mxu0 0
      %1685 = vmatmul.mubr.bf16.gmra.mxu0 %v1562
      %v1686 = vpop.f32.mrf.mxu0
      %v1687 = vadd.f32 %v582, %v1686
      %v1688 = vpop.f32.mrf.mxu0
      %v1689 = vpop.f32.mrf.mxu0
      %v1690 = vadd.f32 %v582, %v1689
      %v1691 = vpop.f32.mrf.mxu0
      %1692 = vmatprep.mubr.bf16.mxu0 0
      %1693 = vmatmul.mubr.bf16.gmra.mxu0 %v1563
      %v1694 = vpop.f32.mrf.mxu0
      %v1695 = vadd.f32 %v582, %v1694
      %v1696 = vpop.f32.mrf.mxu0
      %v1697 = vpop.f32.mrf.mxu0
      %v1698 = vadd.f32 %v582, %v1697
      %v1699 = vpop.f32.mrf.mxu0
      %1700 = vdwg.mxu0
      %v1701 = vpack.c.bf16 %v1602, %v1599
      %v1702 = vpack.c.bf16 %v1610, %v1607
      %v1703 = vpack.c.bf16 %v1618, %v1615
      %v1704 = vpack.c.bf16 %v1626, %v1623
      %v1705 = vpack.c.bf16 %v1634, %v1631
      %v1706 = vpack.c.bf16 %v1642, %v1639
      %v1707 = vpack.c.bf16 %v1650, %v1647
      %v1708 = vpack.c.bf16 %v1658, %v1655
      %v1709 = vpack.c.bf16 %v1666, %v1663
      %v1710 = vpack.c.bf16 %v1674, %v1671
      %v1711 = vpack.c.bf16 %v1682, %v1679
      %v1712 = vpack.c.bf16 %v1690, %v1687
      %v1713 = vpack.c.bf16 %v1698, %v1695
      %v1727 = vunpack.c.l.b16 %v1701
      %v1728 = vunpack.c.h.b16 %v1701
      %v1729 = vunpack.c.l.b16 %v1702
      %v1730 = vunpack.c.h.b16 %v1702
      %v1731 = vunpack.c.l.b16 %v1703
      %v1732 = vunpack.c.h.b16 %v1703
      %v1733 = vunpack.c.l.b16 %v1704
      %v1734 = vunpack.c.h.b16 %v1704
      %v1735 = vunpack.c.l.b16 %v1705
      %v1736 = vunpack.c.h.b16 %v1705
      %v1737 = vunpack.c.l.b16 %v1706
      %v1738 = vunpack.c.h.b16 %v1706
      %v1739 = vunpack.c.l.b16 %v1707
      %v1740 = vunpack.c.h.b16 %v1707
      %v1741 = vunpack.c.l.b16 %v1708
      %v1742 = vunpack.c.h.b16 %v1708
      %v1743 = vunpack.c.l.b16 %v1709
      %v1744 = vunpack.c.h.b16 %v1709
      %v1745 = vunpack.c.l.b16 %v1710
      %v1746 = vunpack.c.h.b16 %v1710
      %v1747 = vunpack.c.l.b16 %v1711
      %v1748 = vunpack.c.h.b16 %v1711
      %v1749 = vunpack.c.l.b16 %v1712
      %v1750 = vunpack.c.h.b16 %v1712
      %v1751 = vunpack.c.l.b16 %v1713
      %v1752 = vunpack.c.h.b16 %v1713
      %v1753 = vpack.c.b16 %v1727, %v1727
      %v1754 = vpack.c.b16 %v1728, %v1728
      %v1755 = vpack.c.b16 %v1729, %v1729
      %v1756 = vpack.c.b16 %v1730, %v1730
      %v1757 = vpack.c.b16 %v1731, %v1731
      %v1758 = vpack.c.b16 %v1732, %v1732
      %v1759 = vpack.c.b16 %v1733, %v1733
      %v1760 = vpack.c.b16 %v1734, %v1734
      %v1761 = vpack.c.b16 %v1735, %v1735
      %v1762 = vpack.c.b16 %v1736, %v1736
      %v1763 = vpack.c.b16 %v1737, %v1737
      %v1764 = vpack.c.b16 %v1738, %v1738
      %v1765 = vpack.c.b16 %v1739, %v1739
      %v1766 = vpack.c.b16 %v1740, %v1740
      %v1767 = vpack.c.b16 %v1741, %v1741
      %v1768 = vpack.c.b16 %v1742, %v1742
      %v1769 = vpack.c.b16 %v1743, %v1743
      %v1770 = vpack.c.b16 %v1744, %v1744
      %v1771 = vpack.c.b16 %v1745, %v1745
      %v1772 = vpack.c.b16 %v1746, %v1746
      %v1773 = vpack.c.b16 %v1747, %v1747
      %v1774 = vpack.c.b16 %v1748, %v1748
      %v1775 = vpack.c.b16 %v1749, %v1749
      %v1776 = vpack.c.b16 %v1750, %v1750
      %v1777 = vpack.c.b16 %v1751, %v1751
      %v1778 = vpack.c.b16 %v1752, %v1752
      %1805 = vst [vmem:[%s228 + $0x8] sm:$0xf] %v1753
      %1806 = vst [vmem:[%s228 + $0x18] sm:$0xf] %v1754
      %1807 = vst [vmem:[%s228 + $0x28] sm:$0xf] %v1755
      %1808 = vst [vmem:[%s228 + $0x38] sm:$0xf] %v1756
      %1809 = vst [vmem:[%s228 + $0x48] sm:$0xf] %v1757
      %1810 = vst [vmem:[%s228 + $0x58] sm:$0xf] %v1758
      %1811 = vst [vmem:[%s228 + $0x68] sm:$0xf] %v1759
      %1812 = vst [vmem:[%s228 + $0x78] sm:$0xf] %v1760
      %1813 = vst [vmem:[%s228 + $0x88] sm:$0xf] %v1761
      %1814 = vst [vmem:[%s228 + $0x98] sm:$0xf] %v1762
      %1815 = vst [vmem:[%s228 + $0xa8] sm:$0xf] %v1763
      %1816 = vst [vmem:[%s228 + $0xb8] sm:$0xf] %v1764
      %1817 = vst [vmem:[%s228 + $0xc8] sm:$0xf] %v1765
      %1818 = vst [vmem:[%s228 + $0xd8] sm:$0xf] %v1766
      %1819 = vst [vmem:[%s228 + $0xe8] sm:$0xf] %v1767
      %1820 = vst [vmem:[%s228 + $0xf8] sm:$0xf] %v1768
      %1821 = vst [vmem:[%s228 + $0x108] sm:$0xf] %v1769
      %1822 = vst [vmem:[%s228 + $0x118] sm:$0xf] %v1770
      %1823 = vst [vmem:[%s228 + $0x128] sm:$0xf] %v1771
      %1824 = vst [vmem:[%s228 + $0x138] sm:$0xf] %v1772
      %1825 = vst [vmem:[%s228 + $0x148] sm:$0xf] %v1773
      %1826 = vst [vmem:[%s228 + $0x158] sm:$0xf] %v1774
      %1827 = vst [vmem:[%s228 + $0x168] sm:$0xf] %v1775
      %1828 = vst [vmem:[%s228 + $0x178] sm:$0xf] %v1776
      %1829 = vst [vmem:[%s228 + $0x188] sm:$0xf] %v1777
      %1830 = vst [vmem:[%s228 + $0x198] sm:$0xf] %v1778
      %v1831 = vld [vmem:[%s1 + $0xc] sm:$0xf]
      %v1832 = vld [vmem:[%s1 + $0x1c] sm:$0xf]
      %v1833 = vld [vmem:[%s1 + $0x2c] sm:$0xf]
      %v1834 = vld [vmem:[%s1 + $0x3c] sm:$0xf]
      %v1835 = vld [vmem:[%s2 + $0x3] sm:$0x1]
      %v1837 = vlaneseq
      %v1838 = vshrl.u32 %v1837, 7
      %v1839 = vsub.s32 0, %v1838
      %v1840 = vrot.slane %v1835, %v1839
      %v1846 = vunpack.c.l.b16 %v1831
      %v1847 = vunpack.c.l.b16 %v1832
      %v1848 = vunpack.c.l.b16 %v1833
      %v1849 = vunpack.c.l.b16 %v1834
      %v1850 = vpack.c.b16 %v1847, %v1846
      %v1851 = vpack.c.b16 %v1849, %v1848
      %1854 = vmatprep.subr.bf16.mxu0 0
      %1855 = vmatpush1.bf16.msra.mxu0 0
      %1856 = vmatprep.subr.bf16.mxu0 0
      %1857 = vmatpush1.bf16.msra.mxu0 0
      %1858 = vmatprep.subr.bf16.mxu0 0
      %1859 = vmatpush1.bf16.msra.mxu0 0
      %1860 = vmatprep.subr.bf16.mxu0 0
      %1861 = vmatpush1.bf16.msra.mxu0 0
      %1862 = vmatprep.subr.bf16.mxu0 0
      %1863 = vmatpush1.bf16.msra.mxu0 0
      %1864 = vmatprep.subr.bf16.mxu0 0
      %1865 = vmatpush1.bf16.msra.mxu0 0
      %1866 = vmatprep.subr.bf16.mxu0 0
      %1867 = vmatpush1.bf16.msra.mxu0 %v1851
      %1868 = vmatprep.subr.bf16.mxu0 0
      %1869 = vmatpush1.bf16.msra.mxu0 %v1850
      %1870 = vmatprep.subr.bf16.mxu0 0
      %1871 = vmatpush2.bf16.msra.mxu0 0
      %1872 = vmatprep.subr.bf16.mxu0 0
      %1873 = vmatpush2.bf16.msra.mxu0 0
      %1874 = vmatprep.subr.bf16.mxu0 0
      %1875 = vmatpush2.bf16.msra.mxu0 0
      %1876 = vmatprep.subr.bf16.mxu0 0
      %1877 = vmatpush2.bf16.msra.mxu0 0
      %1878 = vmatprep.subr.bf16.mxu0 0
      %1879 = vmatpush2.bf16.msra.mxu0 0
      %1880 = vmatprep.subr.bf16.mxu0 0
      %1881 = vmatpush2.bf16.msra.mxu0 0
      %1882 = vmatprep.subr.bf16.mxu0 0
      %1883 = vmatpush2.bf16.msra.mxu0 0
      %1884 = vmatprep.subr.bf16.mxu0 0
      %1885 = vmatpush2.bf16.msra.mxu0 0
      %1886 = vmatprep.mubr.bf16.mxu0 0
      %1887 = vmatmul.mubr.bf16.gmra.mxu0 %v364
      %v1888 = vpop.f32.mrf.mxu0
      %v1889 = vadd.f32 %v1840, %v1888
      %v1890 = vpop.f32.mrf.mxu0
      %v1891 = vpop.f32.mrf.mxu0
      %v1892 = vadd.f32 %v1840, %v1891
      %v1893 = vpop.f32.mrf.mxu0
      %1894 = vmatprep.mubr.bf16.mxu0 0
      %1895 = vmatmul.mubr.bf16.gmra.mxu0 %v367
      %v1896 = vpop.f32.mrf.mxu0
      %v1897 = vadd.f32 %v1840, %v1896
      %v1898 = vpop.f32.mrf.mxu0
      %v1899 = vpop.f32.mrf.mxu0
      %v1900 = vadd.f32 %v1840, %v1899
      %v1901 = vpop.f32.mrf.mxu0
      %1902 = vmatprep.mubr.bf16.mxu0 0
      %1903 = vmatmul.mubr.bf16.gmra.mxu0 %v370
      %v1904 = vpop.f32.mrf.mxu0
      %v1905 = vadd.f32 %v1840, %v1904
      %v1906 = vpop.f32.mrf.mxu0
      %v1907 = vpop.f32.mrf.mxu0
      %v1908 = vadd.f32 %v1840, %v1907
      %v1909 = vpop.f32.mrf.mxu0
      %1910 = vmatprep.mubr.bf16.mxu0 0
      %1911 = vmatmul.mubr.bf16.gmra.mxu0 %v373
      %v1912 = vpop.f32.mrf.mxu0
      %v1913 = vadd.f32 %v1840, %v1912
      %v1914 = vpop.f32.mrf.mxu0
      %v1915 = vpop.f32.mrf.mxu0
      %v1916 = vadd.f32 %v1840, %v1915
      %v1917 = vpop.f32.mrf.mxu0
      %1918 = vmatprep.mubr.bf16.mxu0 0
      %1919 = vmatmul.mubr.bf16.gmra.mxu0 %v376
      %v1920 = vpop.f32.mrf.mxu0
      %v1921 = vadd.f32 %v1840, %v1920
      %v1922 = vpop.f32.mrf.mxu0
      %v1923 = vpop.f32.mrf.mxu0
      %v1924 = vadd.f32 %v1840, %v1923
      %v1925 = vpop.f32.mrf.mxu0
      %1926 = vmatprep.mubr.bf16.mxu0 0
      %1927 = vmatmul.mubr.bf16.gmra.mxu0 %v379
      %v1928 = vpop.f32.mrf.mxu0
      %v1929 = vadd.f32 %v1840, %v1928
      %v1930 = vpop.f32.mrf.mxu0
      %v1931 = vpop.f32.mrf.mxu0
      %v1932 = vadd.f32 %v1840, %v1931
      %v1933 = vpop.f32.mrf.mxu0
      %1934 = vmatprep.mubr.bf16.mxu0 0
      %1935 = vmatmul.mubr.bf16.gmra.mxu0 %v382
      %v1936 = vpop.f32.mrf.mxu0
      %v1937 = vadd.f32 %v1840, %v1936
      %v1938 = vpop.f32.mrf.mxu0
      %v1939 = vpop.f32.mrf.mxu0
      %v1940 = vadd.f32 %v1840, %v1939
      %v1941 = vpop.f32.mrf.mxu0
      %1942 = vmatprep.mubr.bf16.mxu0 0
      %1943 = vmatmul.mubr.bf16.gmra.mxu0 %v385
      %v1944 = vpop.f32.mrf.mxu0
      %v1945 = vadd.f32 %v1840, %v1944
      %v1946 = vpop.f32.mrf.mxu0
      %v1947 = vpop.f32.mrf.mxu0
      %v1948 = vadd.f32 %v1840, %v1947
      %v1949 = vpop.f32.mrf.mxu0
      %1950 = vmatprep.mubr.bf16.mxu0 0
      %1951 = vmatmul.mubr.bf16.gmra.mxu0 %v388
      %v1952 = vpop.f32.mrf.mxu0
      %v1953 = vadd.f32 %v1840, %v1952
      %v1954 = vpop.f32.mrf.mxu0
      %v1955 = vpop.f32.mrf.mxu0
      %v1956 = vadd.f32 %v1840, %v1955
      %v1957 = vpop.f32.mrf.mxu0
      %1958 = vmatprep.mubr.bf16.mxu0 0
      %1959 = vmatmul.mubr.bf16.gmra.mxu0 %v391
      %v1960 = vpop.f32.mrf.mxu0
      %v1961 = vadd.f32 %v1840, %v1960
      %v1962 = vpop.f32.mrf.mxu0
      %v1963 = vpop.f32.mrf.mxu0
      %v1964 = vadd.f32 %v1840, %v1963
      %v1965 = vpop.f32.mrf.mxu0
      %1966 = vmatprep.mubr.bf16.mxu0 0
      %1967 = vmatmul.mubr.bf16.gmra.mxu0 %v394
      %v1968 = vpop.f32.mrf.mxu0
      %v1969 = vadd.f32 %v1840, %v1968
      %v1970 = vpop.f32.mrf.mxu0
      %v1971 = vpop.f32.mrf.mxu0
      %v1972 = vadd.f32 %v1840, %v1971
      %v1973 = vpop.f32.mrf.mxu0
      %1974 = vmatprep.mubr.bf16.mxu0 0
      %1975 = vmatmul.mubr.bf16.gmra.mxu0 %v397
      %v1976 = vpop.f32.mrf.mxu0
      %v1977 = vadd.f32 %v1840, %v1976
      %v1978 = vpop.f32.mrf.mxu0
      %v1979 = vpop.f32.mrf.mxu0
      %v1980 = vadd.f32 %v1840, %v1979
      %v1981 = vpop.f32.mrf.mxu0
      %1982 = vmatprep.mubr.bf16.mxu0 0
      %1983 = vmatmul.mubr.bf16.gmra.mxu0 %v400
      %v1984 = vpop.f32.mrf.mxu0
      %v1985 = vadd.f32 %v1840, %v1984
      %v1986 = vpop.f32.mrf.mxu0
      %v1987 = vpop.f32.mrf.mxu0
      %v1988 = vadd.f32 %v1840, %v1987
      %v1989 = vpop.f32.mrf.mxu0
      %1990 = vdwg.mxu0
      %v1991 = vmax.f32 %v1889, 0.0
      %v1992 = vmax.f32 %v1892, 0.0
      %v1993 = vmax.f32 %v1897, 0.0
      %v1994 = vmax.f32 %v1900, 0.0
      %v1995 = vmax.f32 %v1905, 0.0
      %v1996 = vmax.f32 %v1908, 0.0
      %v1997 = vmax.f32 %v1913, 0.0
      %v1998 = vmax.f32 %v1916, 0.0
      %v1999 = vmax.f32 %v1921, 0.0
      %v2000 = vmax.f32 %v1924, 0.0
      %v2001 = vmax.f32 %v1929, 0.0
      %v2002 = vmax.f32 %v1932, 0.0
      %v2003 = vmax.f32 %v1937, 0.0
      %v2004 = vmax.f32 %v1940, 0.0
      %v2005 = vmax.f32 %v1945, 0.0
      %v2006 = vmax.f32 %v1948, 0.0
      %v2007 = vmax.f32 %v1953, 0.0
      %v2008 = vmax.f32 %v1956, 0.0
      %v2009 = vmax.f32 %v1961, 0.0
      %v2010 = vmax.f32 %v1964, 0.0
      %v2011 = vmax.f32 %v1969, 0.0
      %v2012 = vmax.f32 %v1972, 0.0
      %v2013 = vmax.f32 %v1977, 0.0
      %v2014 = vmax.f32 %v1980, 0.0
      %v2015 = vmax.f32 %v1985, 0.0
      %v2016 = vmax.f32 %v1988, 0.0
      %v2017 = vpack.c.bf16 %v1992, %v1991
      %v2018 = vpack.c.bf16 %v1994, %v1993
      %v2019 = vpack.c.bf16 %v1996, %v1995
      %v2020 = vpack.c.bf16 %v1998, %v1997
      %v2021 = vpack.c.bf16 %v2000, %v1999
      %v2022 = vpack.c.bf16 %v2002, %v2001
      %v2023 = vpack.c.bf16 %v2004, %v2003
      %v2024 = vpack.c.bf16 %v2006, %v2005
      %v2025 = vpack.c.bf16 %v2008, %v2007
      %v2026 = vpack.c.bf16 %v2010, %v2009
      %v2027 = vpack.c.bf16 %v2012, %v2011
      %v2028 = vpack.c.bf16 %v2014, %v2013
      %v2029 = vpack.c.bf16 %v2016, %v2015
      %2030 = vmatprep.subr.bf16.mxu0 0
      %2031 = vmatpush1.bf16.msra.mxu0 %v623
      %2032 = vmatprep.subr.bf16.mxu0 0
      %2033 = vmatpush1.bf16.msra.mxu0 %v622
      %2034 = vmatprep.subr.bf16.mxu0 0
      %2035 = vmatpush1.bf16.msra.mxu0 %v621
      %2036 = vmatprep.subr.bf16.mxu0 0
      %2037 = vmatpush1.bf16.msra.mxu0 %v620
      %2038 = vmatprep.subr.bf16.mxu0 0
      %2039 = vmatpush1.bf16.msra.mxu0 %v619
      %2040 = vmatprep.subr.bf16.mxu0 0
      %2041 = vmatpush1.bf16.msra.mxu0 %v618
      %2042 = vmatprep.subr.bf16.mxu0 0
      %2043 = vmatpush1.bf16.msra.mxu0 %v617
      %2044 = vmatprep.subr.bf16.mxu0 0
      %2045 = vmatpush1.bf16.msra.mxu0 %v616
      %2046 = vmatprep.subr.bf16.mxu0 0
      %2047 = vmatpush2.bf16.msra.mxu0 0
      %2048 = vmatprep.subr.bf16.mxu0 0
      %2049 = vmatpush2.bf16.msra.mxu0 0
      %2050 = vmatprep.subr.bf16.mxu0 0
      %2051 = vmatpush2.bf16.msra.mxu0 0
      %2052 = vmatprep.subr.bf16.mxu0 0
      %2053 = vmatpush2.bf16.msra.mxu0 0
      %2054 = vmatprep.subr.bf16.mxu0 0
      %2055 = vmatpush2.bf16.msra.mxu0 0
      %2056 = vmatprep.subr.bf16.mxu0 0
      %2057 = vmatpush2.bf16.msra.mxu0 0
      %2058 = vmatprep.subr.bf16.mxu0 0
      %2059 = vmatpush2.bf16.msra.mxu0 0
      %2060 = vmatprep.subr.bf16.mxu0 0
      %2061 = vmatpush2.bf16.msra.mxu0 0
      %2062 = vmatprep.mubr.bf16.mxu0 0
      %2063 = vmatmul.mubr.bf16.gmra.mxu0 %v2017
      %v2064 = vpop.f32.mrf.mxu0
      %v2065 = vadd.f32 %v582, %v2064
      %v2066 = vpop.f32.mrf.mxu0
      %v2067 = vpop.f32.mrf.mxu0
      %v2068 = vadd.f32 %v582, %v2067
      %v2069 = vpop.f32.mrf.mxu0
      %2070 = vmatprep.mubr.bf16.mxu0 0
      %2071 = vmatmul.mubr.bf16.gmra.mxu0 %v2018
      %v2072 = vpop.f32.mrf.mxu0
      %v2073 = vadd.f32 %v582, %v2072
      %v2074 = vpop.f32.mrf.mxu0
      %v2075 = vpop.f32.mrf.mxu0
      %v2076 = vadd.f32 %v582, %v2075
      %v2077 = vpop.f32.mrf.mxu0
      %2078 = vmatprep.mubr.bf16.mxu0 0
      %2079 = vmatmul.mubr.bf16.gmra.mxu0 %v2019
      %v2080 = vpop.f32.mrf.mxu0
      %v2081 = vadd.f32 %v582, %v2080
      %v2082 = vpop.f32.mrf.mxu0
      %v2083 = vpop.f32.mrf.mxu0
      %v2084 = vadd.f32 %v582, %v2083
      %v2085 = vpop.f32.mrf.mxu0
      %2086 = vmatprep.mubr.bf16.mxu0 0
      %2087 = vmatmul.mubr.bf16.gmra.mxu0 %v2020
      %v2088 = vpop.f32.mrf.mxu0
      %v2089 = vadd.f32 %v582, %v2088
      %v2090 = vpop.f32.mrf.mxu0
      %v2091 = vpop.f32.mrf.mxu0
      %v2092 = vadd.f32 %v582, %v2091
      %v2093 = vpop.f32.mrf.mxu0
      %2094 = vmatprep.mubr.bf16.mxu0 0
      %2095 = vmatmul.mubr.bf16.gmra.mxu0 %v2021
      %v2096 = vpop.f32.mrf.mxu0
      %v2097 = vadd.f32 %v582, %v2096
      %v2098 = vpop.f32.mrf.mxu0
      %v2099 = vpop.f32.mrf.mxu0
      %v2100 = vadd.f32 %v582, %v2099
      %v2101 = vpop.f32.mrf.mxu0
      %2102 = vmatprep.mubr.bf16.mxu0 0
      %2103 = vmatmul.mubr.bf16.gmra.mxu0 %v2022
      %v2104 = vpop.f32.mrf.mxu0
      %v2105 = vadd.f32 %v582, %v2104
      %v2106 = vpop.f32.mrf.mxu0
      %v2107 = vpop.f32.mrf.mxu0
      %v2108 = vadd.f32 %v582, %v2107
      %v2109 = vpop.f32.mrf.mxu0
      %2110 = vmatprep.mubr.bf16.mxu0 0
      %2111 = vmatmul.mubr.bf16.gmra.mxu0 %v2023
      %v2112 = vpop.f32.mrf.mxu0
      %v2113 = vadd.f32 %v582, %v2112
      %v2114 = vpop.f32.mrf.mxu0
      %v2115 = vpop.f32.mrf.mxu0
      %v2116 = vadd.f32 %v582, %v2115
      %v2117 = vpop.f32.mrf.mxu0
      %2118 = vmatprep.mubr.bf16.mxu0 0
      %2119 = vmatmul.mubr.bf16.gmra.mxu0 %v2024
      %v2120 = vpop.f32.mrf.mxu0
      %v2121 = vadd.f32 %v582, %v2120
      %v2122 = vpop.f32.mrf.mxu0
      %v2123 = vpop.f32.mrf.mxu0
      %v2124 = vadd.f32 %v582, %v2123
      %v2125 = vpop.f32.mrf.mxu0
      %2126 = vmatprep.mubr.bf16.mxu0 0
      %2127 = vmatmul.mubr.bf16.gmra.mxu0 %v2025
      %v2128 = vpop.f32.mrf.mxu0
      %v2129 = vadd.f32 %v582, %v2128
      %v2130 = vpop.f32.mrf.mxu0
      %v2131 = vpop.f32.mrf.mxu0
      %v2132 = vadd.f32 %v582, %v2131
      %v2133 = vpop.f32.mrf.mxu0
      %2134 = vmatprep.mubr.bf16.mxu0 0
      %2135 = vmatmul.mubr.bf16.gmra.mxu0 %v2026
      %v2136 = vpop.f32.mrf.mxu0
      %v2137 = vadd.f32 %v582, %v2136
      %v2138 = vpop.f32.mrf.mxu0
      %v2139 = vpop.f32.mrf.mxu0
      %v2140 = vadd.f32 %v582, %v2139
      %v2141 = vpop.f32.mrf.mxu0
      %2142 = vmatprep.mubr.bf16.mxu0 0
      %2143 = vmatmul.mubr.bf16.gmra.mxu0 %v2027
      %v2144 = vpop.f32.mrf.mxu0
      %v2145 = vadd.f32 %v582, %v2144
      %v2146 = vpop.f32.mrf.mxu0
      %v2147 = vpop.f32.mrf.mxu0
      %v2148 = vadd.f32 %v582, %v2147
      %v2149 = vpop.f32.mrf.mxu0
      %2150 = vmatprep.mubr.bf16.mxu0 0
      %2151 = vmatmul.mubr.bf16.gmra.mxu0 %v2028
      %v2152 = vpop.f32.mrf.mxu0
      %v2153 = vadd.f32 %v582, %v2152
      %v2154 = vpop.f32.mrf.mxu0
      %v2155 = vpop.f32.mrf.mxu0
      %v2156 = vadd.f32 %v582, %v2155
      %v2157 = vpop.f32.mrf.mxu0
      %2158 = vmatprep.mubr.bf16.mxu0 0
      %2159 = vmatmul.mubr.bf16.gmra.mxu0 %v2029
      %v2160 = vpop.f32.mrf.mxu0
      %v2161 = vadd.f32 %v582, %v2160
      %v2162 = vpop.f32.mrf.mxu0
      %v2163 = vpop.f32.mrf.mxu0
      %v2164 = vadd.f32 %v582, %v2163
      %v2165 = vpop.f32.mrf.mxu0
      %2166 = vdwg.mxu0
      %v2167 = vpack.c.bf16 %v2068, %v2065
      %v2168 = vpack.c.bf16 %v2076, %v2073
      %v2169 = vpack.c.bf16 %v2084, %v2081
      %v2170 = vpack.c.bf16 %v2092, %v2089
      %v2171 = vpack.c.bf16 %v2100, %v2097
      %v2172 = vpack.c.bf16 %v2108, %v2105
      %v2173 = vpack.c.bf16 %v2116, %v2113
      %v2174 = vpack.c.bf16 %v2124, %v2121
      %v2175 = vpack.c.bf16 %v2132, %v2129
      %v2176 = vpack.c.bf16 %v2140, %v2137
      %v2177 = vpack.c.bf16 %v2148, %v2145
      %v2178 = vpack.c.bf16 %v2156, %v2153
      %v2179 = vpack.c.bf16 %v2164, %v2161
      %v2193 = vunpack.c.l.b16 %v2167
      %v2194 = vunpack.c.h.b16 %v2167
      %v2195 = vunpack.c.l.b16 %v2168
      %v2196 = vunpack.c.h.b16 %v2168
      %v2197 = vunpack.c.l.b16 %v2169
      %v2198 = vunpack.c.h.b16 %v2169
      %v2199 = vunpack.c.l.b16 %v2170
      %v2200 = vunpack.c.h.b16 %v2170
      %v2201 = vunpack.c.l.b16 %v2171
      %v2202 = vunpack.c.h.b16 %v2171
      %v2203 = vunpack.c.l.b16 %v2172
      %v2204 = vunpack.c.h.b16 %v2172
      %v2205 = vunpack.c.l.b16 %v2173
      %v2206 = vunpack.c.h.b16 %v2173
      %v2207 = vunpack.c.l.b16 %v2174
      %v2208 = vunpack.c.h.b16 %v2174
      %v2209 = vunpack.c.l.b16 %v2175
      %v2210 = vunpack.c.h.b16 %v2175
      %v2211 = vunpack.c.l.b16 %v2176
      %v2212 = vunpack.c.h.b16 %v2176
      %v2213 = vunpack.c.l.b16 %v2177
      %v2214 = vunpack.c.h.b16 %v2177
      %v2215 = vunpack.c.l.b16 %v2178
      %v2216 = vunpack.c.h.b16 %v2178
      %v2217 = vunpack.c.l.b16 %v2179
      %v2218 = vunpack.c.h.b16 %v2179
      %v2219 = vpack.c.b16 %v2193, %v2193
      %v2220 = vpack.c.b16 %v2194, %v2194
      %v2221 = vpack.c.b16 %v2195, %v2195
      %v2222 = vpack.c.b16 %v2196, %v2196
      %v2223 = vpack.c.b16 %v2197, %v2197
      %v2224 = vpack.c.b16 %v2198, %v2198
      %v2225 = vpack.c.b16 %v2199, %v2199
      %v2226 = vpack.c.b16 %v2200, %v2200
      %v2227 = vpack.c.b16 %v2201, %v2201
      %v2228 = vpack.c.b16 %v2202, %v2202
      %v2229 = vpack.c.b16 %v2203, %v2203
      %v2230 = vpack.c.b16 %v2204, %v2204
      %v2231 = vpack.c.b16 %v2205, %v2205
      %v2232 = vpack.c.b16 %v2206, %v2206
      %v2233 = vpack.c.b16 %v2207, %v2207
      %v2234 = vpack.c.b16 %v2208, %v2208
      %v2235 = vpack.c.b16 %v2209, %v2209
      %v2236 = vpack.c.b16 %v2210, %v2210
      %v2237 = vpack.c.b16 %v2211, %v2211
      %v2238 = vpack.c.b16 %v2212, %v2212
      %v2239 = vpack.c.b16 %v2213, %v2213
      %v2240 = vpack.c.b16 %v2214, %v2214
      %v2241 = vpack.c.b16 %v2215, %v2215
      %v2242 = vpack.c.b16 %v2216, %v2216
      %v2243 = vpack.c.b16 %v2217, %v2217
      %v2244 = vpack.c.b16 %v2218, %v2218
      %2271 = vst [vmem:[%s228 + $0xc] sm:$0xf] %v2219
      %2272 = vst [vmem:[%s228 + $0x1c] sm:$0xf] %v2220
      %2273 = vst [vmem:[%s228 + $0x2c] sm:$0xf] %v2221
      %2274 = vst [vmem:[%s228 + $0x3c] sm:$0xf] %v2222
      %2275 = vst [vmem:[%s228 + $0x4c] sm:$0xf] %v2223
      %2276 = vst [vmem:[%s228 + $0x5c] sm:$0xf] %v2224
      %2277 = vst [vmem:[%s228 + $0x6c] sm:$0xf] %v2225
      %2278 = vst [vmem:[%s228 + $0x7c] sm:$0xf] %v2226
      %2279 = vst [vmem:[%s228 + $0x8c] sm:$0xf] %v2227
      %2280 = vst [vmem:[%s228 + $0x9c] sm:$0xf] %v2228
      %2281 = vst [vmem:[%s228 + $0xac] sm:$0xf] %v2229
      %2282 = vst [vmem:[%s228 + $0xbc] sm:$0xf] %v2230
      %2283 = vst [vmem:[%s228 + $0xcc] sm:$0xf] %v2231
      %2284 = vst [vmem:[%s228 + $0xdc] sm:$0xf] %v2232
      %2285 = vst [vmem:[%s228 + $0xec] sm:$0xf] %v2233
      %2286 = vst [vmem:[%s228 + $0xfc] sm:$0xf] %v2234
      %2287 = vst [vmem:[%s228 + $0x10c] sm:$0xf] %v2235
      %2288 = vst [vmem:[%s228 + $0x11c] sm:$0xf] %v2236
      %2289 = vst [vmem:[%s228 + $0x12c] sm:$0xf] %v2237
      %2290 = vst [vmem:[%s228 + $0x13c] sm:$0xf] %v2238
      %2291 = vst [vmem:[%s228 + $0x14c] sm:$0xf] %v2239
      %2292 = vst [vmem:[%s228 + $0x15c] sm:$0xf] %v2240
      %2293 = vst [vmem:[%s228 + $0x16c] sm:$0xf] %v2241
      %2294 = vst [vmem:[%s228 + $0x17c] sm:$0xf] %v2242
      %2295 = vst [vmem:[%s228 + $0x18c] sm:$0xf] %v2243
      %2296 = vst [vmem:[%s228 + $0x19c] sm:$0xf] %v2244
      %s2297 = smul.u32 26, %s16
      %p2298 = scmp.lt.s32.totalorder %s2297, 51
      %s2299 = scalar_select %p2298, %s2297, 51
      %s2300 = smul.addr %s2299, 4
      %s2301 = smul.addr %s2300, 4
      %s2302 = scalar_lea.vmem %s5, %s2301
      // Predicated region
      $region41: #{mask_rcnn_predictor_head.1} parent=39 // pred_check
        %p2303 = pneg %p144
      $region42: #{mask_rcnn_predictor_head.1} parent=39 // pred_check_branch
        %2305 = sbr.rel (%p2303) target = $region44
      $region43: #{mask_rcnn_predictor_head.1} parent=39 // pred_region
        %s2306 = smul.u32 26, %s16
      $region44: #{mask_rcnn_predictor_head.1} parent=39 // pred_fallthru
        _
    $region40: #{mask_rcnn_predictor_head.1} parent=5 // pred_fallthru
      _
    %p2307 = scmp.le.s32.totalorder 2, %s11
    // Predicated region
    $region45: #{mask_rcnn_predictor_head.1} parent=5 // pred_check
      %p2308 = pneg %p2307
    $region46: #{mask_rcnn_predictor_head.1} parent=5 // pred_check_branch
      %2310 = sbr.rel (%p2308) target = $region48
    $region47: #{mask_rcnn_predictor_head.1} parent=5 // pred_region
      %s2311 = ssub.s32 %s11, 2
      // Predicated region
      $region49: #{mask_rcnn_predictor_head.1} parent=47 // pred_check
        %p2312 = pneg %p150
      $region50: #{mask_rcnn_predictor_head.1} parent=47 // pred_check_branch
        %2314 = sbr.rel (%p2312) target = $region52
      $region51: #{mask_rcnn_predictor_head.1} parent=47 // pred_region
        %s2315 = smul.u32 26, %s17
        %p2316 = scmp.lt.s32.totalorder %s2315, 51
        %s2317 = scalar_select %p2316, %s2315, 51
        %s2318 = smul.addr %s2317, 4
        %s2319 = smul.addr %s2318, 4
        %s2320 = scalar_lea.vmem %s5, %s2319
      $region52: #{mask_rcnn_predictor_head.1} parent=47 // pred_fallthru
        _
    $region48: #{mask_rcnn_predictor_head.1} parent=5 // pred_fallthru
      _
  $region6: #{mask_rcnn_predictor_head.1} parent=0 // loop_footer
    %s15 = sadd.s32 1, %s11
  $region7: #{mask_rcnn_predictor_head.1} parent=0 // loop_footer_branch
    %10 = sbr.rel target = $region3
  $region8: #{mask_rcnn_predictor_head.1} parent=0 // loop_exit
    _

</llo_original>
